<compile_context>
chip_gen: v5e
topology: v5e:2x2
jax: 0.10.0
libtpu: 0.0.40
codegen_flags: <defaults>
</compile_context>

<pallas_src>
import functools

import jax
import jax.numpy as jnp
from jax.experimental import pallas as pl
from jax.experimental.pallas import tpu as pltpu


def _round_up(x, m):
    return -(-x // m) * m


# ---------------------------------------------------------------------------
# Kernel 1: fused conv3x3(stride1,pad1) + bias + ReLU + 2x2/2 maxpool.
# One (4*Cout, 16*Cin) @ (16*Cin, tile) matmul per lane tile; the four pool
# offsets live in the 4 Cout-row groups and are max-reduced before bias/ReLU.
# ---------------------------------------------------------------------------
def _conv_pool_kernel(w_ref, b_ref, x_ref, o_ref, *, cout):
    r = jnp.dot(w_ref[...], x_ref[...],
                preferred_element_type=jnp.float32)          # (4*Cout, tile) f32
    m = jnp.maximum(
        jnp.maximum(r[0 * cout:1 * cout], r[1 * cout:2 * cout]),
        jnp.maximum(r[2 * cout:3 * cout], r[3 * cout:4 * cout]))   # pool (f32)
    o_ref[...] = jnp.maximum(m + b_ref[...], 0.0).astype(o_ref.dtype)


def _pool_parity_planes(x_cbhw):
    """X16[(a*4+b)*Cin+ci, (n,py,px)] = xpad[ci, n, 2*py+a, 2*px+b], a,b in 0..3.

    x_cbhw: (Cin, B, H, W).  Returns (16*Cin, B*(H//2)*(W//2)).  Only ~4x the
    input bytes of XLA glue (vs ~9x for a full im2col) and built from static
    strided slices that XLA fuses into a single pad/slice/concat fusion.
    """
    Cin, B, H, W = x_cbhw.shape
    Hp, Wp = H // 2, W // 2
    xp = jnp.pad(x_cbhw, ((0, 0), (0, 0), (1, 1), (1, 1)))
    planes = [xp[:, :, a:a + H:2, b:b + W:2] for a in range(4) for b in range(4)]
    return jnp.stack(planes, axis=0).reshape(16 * Cin, B * Hp * Wp)


def conv3x3_relu_pool(x_cbhw, w_stacked, b_col, *, lane_tile=4096):
    """maxpool2x2(relu(conv3x3(x) + b)) with channel-major layouts.

    x_cbhw:    (Cin, B, H, W) bf16
    w_stacked: (4*Cout, 16*Cin) bf16 (pool-offset-stacked, see prepare_params)
    b_col:     (Cout, 1) f32
    Returns (Cout, B, H/2, W/2) bf16.
    """
    Cin, B, H, W = x_cbhw.shape
    four_cout, k16 = w_stacked.shape
    Cout = four_cout // 4
    assert k16 == 16 * Cin and H % 2 == 0 and W % 2 == 0
    Hp, Wp = H // 2, W // 2
    M = B * Hp * Wp

    # >=2 grid steps whenever possible (v7x megacore), tile multiple of 128,
    # capped at lane_tile so the double-buffered (16*Cin, tile) block + f32
    # intermediates stay well under the 32 MiB scoped VMEM on every generation.
    tile = min(lane_tile, max(128, _round_up(-(-M // 2), 128)))
    Mp = _round_up(M, tile)

    x16 = _pool_parity_planes(x_cbhw)                         # (16*Cin, M) bf16
    if Mp != M:
        x16 = jnp.pad(x16, ((0, 0), (0, Mp - M)))

    out = pl.pallas_call(
        functools.partial(_conv_pool_kernel, cout=Cout),
        out_shape=jax.ShapeDtypeStruct((Cout, Mp), x_cbhw.dtype),
        grid=(Mp // tile,),
        in_specs=[
            pl.BlockSpec((4 * Cout, 16 * Cin), lambda i: (0, 0)),  # weights (resident)
            pl.BlockSpec((Cout, 1), lambda i: (0, 0)),             # bias (resident)
            pl.BlockSpec((16 * Cin, tile), lambda i: (0, i)),      # parity planes
        ],
        out_specs=pl.BlockSpec((Cout, tile), lambda i: (0, i)),
        compiler_params=pltpu.CompilerParams(
            dimension_semantics=("parallel",),
            vmem_limit_bytes=32 * 1024 * 1024,
        ),
    )(w_stacked, b_col, x16)
    # Padded lane columns (Mp > M) are garbage (relu(bias)) -> sliced off here.
    return out[:, :M].reshape(Cout, B, Hp, Wp)


# ---------------------------------------------------------------------------
# Kernel 2: fused fc1(+bias, ReLU) + fc2(+bias), fc2 output padded to 128 lanes.
# ---------------------------------------------------------------------------
def _fc_fused_kernel(x_ref, w1_ref, b1_ref, w2_ref, b2_ref, o_ref):
    h = jnp.dot(x_ref[...], w1_ref[...], preferred_element_type=jnp.float32)
    h = jnp.maximum(h + b1_ref[...], 0.0)                              # f32
    o = jnp.dot(h.astype(w2_ref.dtype), w2_ref[...],
                preferred_element_type=jnp.float32)
    o_ref[...] = (o + b2_ref[...]).astype(o_ref.dtype)


def fc_relu_fc(x, w1, b1, w2p, b2p, *, row_tile=512):
    """relu(x @ w1 + b1) @ w2p + b2p.  x: (B, 2048) bf16 -> (B, 128) f32."""
    B, K1 = x.shape
    K1b, N1 = w1.shape
    N1b, N2 = w2p.shape
    assert K1 == K1b and N1 == N1b

    if B >= 16:
        # >=2 grid steps for v7x megacore, rows padded to the tile.
        tile_b = min(row_tile, max(8, _round_up(-(-B // 2), 8)))
        Bp = _round_up(B, tile_b)
        if Bp != B:
            x = jnp.pad(x, ((0, Bp - B), (0, 0)))
    else:
        tile_b, Bp = B, B

    out = pl.pallas_call(
        _fc_fused_kernel,
        out_shape=jax.ShapeDtypeStruct((Bp, N2), jnp.float32),
        grid=(Bp // tile_b,),
        in_specs=[
            pl.BlockSpec((tile_b, K1), lambda i: (i, 0)),
            pl.BlockSpec((K1, N1), lambda i: (0, 0)),      # fc1 w (resident)
            pl.BlockSpec((1, N1), lambda i: (0, 0)),       # fc1 b (resident)
            pl.BlockSpec((N1, N2), lambda i: (0, 0)),      # fc2 w (resident)
            pl.BlockSpec((1, N2), lambda i: (0, 0)),       # fc2 b (resident)
        ],
        out_specs=pl.BlockSpec((tile_b, N2), lambda i: (i, 0)),
        compiler_params=pltpu.CompilerParams(
            dimension_semantics=("parallel",),
            vmem_limit_bytes=32 * 1024 * 1024,
        ),
    )(x, w1, b1, w2p, b2p)
    return out[:B]


# ---------------------------------------------------------------------------
# Parameters (torch layouts) + one-time kernel-layout preparation.
# ---------------------------------------------------------------------------
def init_params(key, num_classes=10):
    ks = jax.random.split(key, 8)

    def u(k, shape, fan_in):
        bound = 1.0 / jnp.sqrt(fan_in)
        return jax.random.uniform(k, shape, jnp.float32, -bound, bound)

    return {
        "conv1_w": u(ks[0], (16, 3, 3, 3), 3 * 9),
        "conv1_b": u(ks[1], (16,), 3 * 9),
        "conv2_w": u(ks[2], (32, 16, 3, 3), 16 * 9),
        "conv2_b": u(ks[3], (32,), 16 * 9),
        "fc1_w": u(ks[4], (128, 32 * 8 * 8), 32 * 8 * 8),   # torch (out, in)
        "fc1_b": u(ks[5], (128,), 32 * 8 * 8),
        "fc2_w": u(ks[6], (num_classes, 128), 128),
        "fc2_b": u(ks[7], (num_classes,), 128),
    }


def prepare_params(params, num_classes=10):
    """One-time prep: pool-offset-stacked conv weights, bf16 matmul operands,
    pre-transposed fc weights, fc2 padded to 128 lanes."""

    def conv_w_pool_stacked(w_oihw):
        # (Cout, Cin, 3, 3) -> (4*Cout, 16*Cin): row p*Cout+co is pool offset
        # p = (ry, rx); column (a*4+b)*Cin+ci carries w[co, ci, a-ry, b-rx]
        # (zero outside the 3x3 window) to match the X16 parity-plane layout.
        cout, cin = w_oihw.shape[0], w_oihw.shape[1]
        w_t = jnp.transpose(w_oihw, (0, 2, 3, 1))            # (cout, 3, 3, cin)
        wb = jnp.zeros((4, cout, 4, 4, cin), jnp.float32)
        for p, (ry, rx) in enumerate(((0, 0), (0, 1), (1, 0), (1, 1))):
            wb = wb.at[p, :, ry:ry + 3, rx:rx + 3, :].set(w_t)
        return wb.reshape(4 * cout, 16 * cin).astype(jnp.bfloat16)

    n2 = _round_up(num_classes, 128)
    fc2_w = jnp.transpose(params["fc2_w"], (1, 0))                    # (128, nc)
    fc2_w = jnp.pad(fc2_w, ((0, 0), (0, n2 - num_classes)))
    fc2_b = jnp.pad(params["fc2_b"], (0, n2 - num_classes))
    return {
        "conv1_w": conv_w_pool_stacked(params["conv1_w"]),            # (64, 48)
        "conv1_b": params["conv1_b"].reshape(-1, 1).astype(jnp.float32),
        "conv2_w": conv_w_pool_stacked(params["conv2_w"]),            # (128, 256)
        "conv2_b": params["conv2_b"].reshape(-1, 1).astype(jnp.float32),
        "fc1_w": jnp.transpose(params["fc1_w"], (1, 0)).astype(jnp.bfloat16),
        "fc1_b": params["fc1_b"].reshape(1, -1).astype(jnp.float32),
        "fc2_w": fc2_w.astype(jnp.bfloat16),                          # (128, 128)
        "fc2_b": fc2_b.reshape(1, -1).astype(jnp.float32),            # (1, 128)
    }


# ---------------------------------------------------------------------------
# Forward pass (semantics of the PyTorch SimpleCNN.forward).
# ---------------------------------------------------------------------------
@functools.partial(jax.jit, static_argnames=("num_classes",))
def simple_cnn_forward(x_nchw, prep, num_classes=10):
    B = x_nchw.shape[0]
    # NCHW -> channel-major (C, B, H, W); bf16 matmul operands, f32 accumulation.
    x = jnp.transpose(x_nchw, (1, 0, 2, 3)).astype(jnp.bfloat16)

    h = conv3x3_relu_pool(x, prep["conv1_w"], prep["conv1_b"])        # (16, B, 16, 16)
    h = conv3x3_relu_pool(h, prep["conv2_w"], prep["conv2_b"])        # (32, B, 8, 8)

    # Flatten exactly like torch's x.view(-1, 32*8*8) on an NCHW tensor.
    flat = jnp.transpose(h, (1, 0, 2, 3)).reshape(B, -1)              # (B, 2048) bf16

    logits = fc_relu_fc(flat, prep["fc1_w"], prep["fc1_b"],
                        prep["fc2_w"], prep["fc2_b"])                 # (B, 128) f32
    return logits[:, :num_classes]


# Pure-JAX f32 reference (torch semantics) for a correctness sanity check.
def _reference_forward(x_nchw, params, num_classes):
    x = x_nchw.astype(jnp.float32)

    def conv(h, w, b):
        y = jax.lax.conv_general_dilated(
            h, w.astype(jnp.float32), window_strides=(1, 1),
            padding=((1, 1), (1, 1)),
            dimension_numbers=("NCHW", "OIHW", "NCHW"))
        return y + b.astype(jnp.float32).reshape(1, -1, 1, 1)

    def pool(h):
        b, c, hh, ww = h.shape
        return h.reshape(b, c, hh // 2, 2, ww // 2, 2).max(axis=(3, 5))

    h = pool(jax.nn.relu(conv(x, params["conv1_w"], params["conv1_b"])))
    h = pool(jax.nn.relu(conv(h, params["conv2_w"], params["conv2_b"])))
    h = h.reshape(x.shape[0], -1)
    h = jax.nn.relu(h @ params["fc1_w"].T + params["fc1_b"])
    return (h @ params["fc2_w"].T + params["fc2_b"])[:, :num_classes]


if __name__ == "__main__":
    key = jax.random.PRNGKey(0)
    k_x, k_p = jax.random.split(key)
    # Spatial must be 32x32 so two 2x2 pools give the 8x8 that fc1 expects.
    x = jax.random.normal(k_x, (2, 3, 32, 32), dtype=jnp.float32)
    params = init_params(k_p, num_classes=10)
    prep = prepare_params(params, num_classes=10)

    logits = simple_cnn_forward(x, prep, num_classes=10)
    jax.block_until_ready(logits)
    assert logits.shape == (2, 10)

    ref = _reference_forward(x, params, 10)
    # bf16 operands with f32 accumulation -> small drift vs the fp32 reference.
    assert jnp.allclose(logits, ref, rtol=1e-1, atol=1e-1), (
        f"max abs diff {jnp.max(jnp.abs(logits - ref))}")
    print("KERNEL_OK")
</pallas_src>

<mosaic_0001>
module attributes {stable_mosaic.version = 11 : i64} {
  func.func @_conv_pool_kernel(%arg0: i32, %arg1: memref<64x48xbf16, #tpu.memory_space<vmem>>, %arg2: memref<16x1xf32, #tpu.memory_space<vmem>>, %arg3: memref<48x256xbf16, #tpu.memory_space<vmem>>, %arg4: memref<16x256xbf16, #tpu.memory_space<vmem>>) attributes {dimension_semantics = [#tpu.dimension_semantics<parallel>], iteration_bounds = array<i64: 2>, scalar_prefetch = 0 : i64, scratch_operands = 0 : i64, tpu.core_type = #tpu.core_type<tc>, window_params = [{pipeline_mode = #tpu.pipeline_mode<synchronous>, transform_indices = @transform_0, window_bounds = array<i64: 64, 48>}, {pipeline_mode = #tpu.pipeline_mode<synchronous>, transform_indices = @transform_1, window_bounds = array<i64: 16, 1>}, {transform_indices = @transform_2, window_bounds = array<i64: 48, 256>}, {transform_indices = @transform_3, window_bounds = array<i64: 16, 256>}]} {
    %c0 = arith.constant 0 : index
    %c0_0 = arith.constant 0 : index
    %0 = vector.load %arg1[%c0, %c0_0] : memref<64x48xbf16, #tpu.memory_space<vmem>>, vector<64x48xbf16>
    %c0_1 = arith.constant 0 : index
    %c0_2 = arith.constant 0 : index
    %1 = vector.load %arg3[%c0_1, %c0_2] : memref<48x256xbf16, #tpu.memory_space<vmem>>, vector<48x256xbf16>
    %cst = arith.constant dense<0.000000e+00> : vector<64x256xf32>
    %2 = tpu.matmul %0, %1, %cst {dimension_numbers = #tpu.dot_dimension_numbers<[1], [0], [0], [1], [0, 0, 1, 1], [], []>} : vector<64x48xbf16>, vector<48x256xbf16>, vector<64x256xf32> -> vector<64x256xf32>
    %3 = vector.extract_strided_slice %2 {offsets = [0, 0], sizes = [16, 256], strides = [1, 1]} : vector<64x256xf32> to vector<16x256xf32>
    %4 = vector.extract_strided_slice %2 {offsets = [16, 0], sizes = [16, 256], strides = [1, 1]} : vector<64x256xf32> to vector<16x256xf32>
    %5 = arith.maximumf %3, %4 : vector<16x256xf32>
    %6 = vector.extract_strided_slice %2 {offsets = [32, 0], sizes = [16, 256], strides = [1, 1]} : vector<64x256xf32> to vector<16x256xf32>
    %7 = vector.extract_strided_slice %2 {offsets = [48, 0], sizes = [16, 256], strides = [1, 1]} : vector<64x256xf32> to vector<16x256xf32>
    %8 = arith.maximumf %6, %7 : vector<16x256xf32>
    %9 = arith.maximumf %5, %8 : vector<16x256xf32>
    %c0_3 = arith.constant 0 : index
    %c0_4 = arith.constant 0 : index
    %10 = vector.load %arg2[%c0_3, %c0_4] : memref<16x1xf32, #tpu.memory_space<vmem>>, vector<16x1xf32>
    %11 = vector.broadcast %10 : vector<16x1xf32> to vector<16x256xf32>
    %12 = arith.addf %9, %11 : vector<16x256xf32>
    %cst_5 = arith.constant 0.000000e+00 : f32
    %13 = vector.broadcast %cst_5 : f32 to vector<16x256xf32>
    %14 = arith.maximumf %12, %13 : vector<16x256xf32>
    %15 = arith.truncf %14 : vector<16x256xf32> to vector<16x256xbf16>
    %c0_6 = arith.constant 0 : index
    %c0_7 = arith.constant 0 : index
    %16 = vector.load %arg4[%c0_6, %c0_7] : memref<16x256xbf16, #tpu.memory_space<vmem>>, vector<16x256xbf16>
    tpu.vector_store %arg4[%c0_6, %c0_7], %15 {strides = array<i32>} : memref<16x256xbf16, #tpu.memory_space<vmem>>, vector<16x256xbf16>,
    return
  }
  func.func @transform_0(%arg0: i32) -> (i32, i32) {
    %c0_i32 = arith.constant 0 : i32
    %c0_i32_0 = arith.constant 0 : i32
    %c0_i32_1 = arith.constant 0 : i32
    return %c0_i32, %c0_i32_0 : i32, i32
  }
  func.func @transform_1(%arg0: i32) -> (i32, i32) {
    %c0_i32 = arith.constant 0 : i32
    %c0_i32_0 = arith.constant 0 : i32
    %c0_i32_1 = arith.constant 0 : i32
    return %c0_i32, %c0_i32_0 : i32, i32
  }
  func.func @transform_2(%arg0: i32) -> (i32, i32) {
    %c0_i32 = arith.constant 0 : i32
    %c0_i32_0 = arith.constant 0 : i32
    return %c0_i32, %arg0 : i32, i32
  }
  func.func @transform_3(%arg0: i32) -> (i32, i32) {
    %c0_i32 = arith.constant 0 : i32
    %c0_i32_0 = arith.constant 0 : i32
    return %c0_i32, %arg0 : i32, i32
  }
}

module attributes {stable_mosaic.version = 11 : i64} {
  func.func @_conv_pool_kernel(%arg0: i32, %arg1: memref<128x256xbf16, #tpu.memory_space<vmem>>, %arg2: memref<32x1xf32, #tpu.memory_space<vmem>>, %arg3: memref<256x128xbf16, #tpu.memory_space<vmem>>, %arg4: memref<32x128xbf16, #tpu.memory_space<vmem>>) attributes {dimension_semantics = [#tpu.dimension_semantics<parallel>], iteration_bounds = array<i64: 1>, scalar_prefetch = 0 : i64, scratch_operands = 0 : i64, tpu.core_type = #tpu.core_type<tc>, window_params = [{pipeline_mode = #tpu.pipeline_mode<synchronous>, transform_indices = @transform_0, window_bounds = array<i64: 128, 256>}, {pipeline_mode = #tpu.pipeline_mode<synchronous>, transform_indices = @transform_1, window_bounds = array<i64: 32, 1>}, {transform_indices = @transform_2, window_bounds = array<i64: 256, 128>}, {transform_indices = @transform_3, window_bounds = array<i64: 32, 128>}]} {
    %c0 = arith.constant 0 : index
    %c0_0 = arith.constant 0 : index
    %0 = vector.load %arg1[%c0, %c0_0] : memref<128x256xbf16, #tpu.memory_space<vmem>>, vector<128x256xbf16>
    %c0_1 = arith.constant 0 : index
    %c0_2 = arith.constant 0 : index
    %1 = vector.load %arg3[%c0_1, %c0_2] : memref<256x128xbf16, #tpu.memory_space<vmem>>, vector<256x128xbf16>
    %cst = arith.constant dense<0.000000e+00> : vector<128x128xf32>
    %2 = tpu.matmul %0, %1, %cst {dimension_numbers = #tpu.dot_dimension_numbers<[1], [0], [0], [1], [0, 0, 1, 1], [], []>} : vector<128x256xbf16>, vector<256x128xbf16>, vector<128x128xf32> -> vector<128x128xf32>
    %3 = vector.extract_strided_slice %2 {offsets = [0, 0], sizes = [32, 128], strides = [1, 1]} : vector<128x128xf32> to vector<32x128xf32>
    %4 = vector.extract_strided_slice %2 {offsets = [32, 0], sizes = [32, 128], strides = [1, 1]} : vector<128x128xf32> to vector<32x128xf32>
    %5 = arith.maximumf %3, %4 : vector<32x128xf32>
    %6 = vector.extract_strided_slice %2 {offsets = [64, 0], sizes = [32, 128], strides = [1, 1]} : vector<128x128xf32> to vector<32x128xf32>
    %7 = vector.extract_strided_slice %2 {offsets = [96, 0], sizes = [32, 128], strides = [1, 1]} : vector<128x128xf32> to vector<32x128xf32>
    %8 = arith.maximumf %6, %7 : vector<32x128xf32>
    %9 = arith.maximumf %5, %8 : vector<32x128xf32>
    %c0_3 = arith.constant 0 : index
    %c0_4 = arith.constant 0 : index
    %10 = vector.load %arg2[%c0_3, %c0_4] : memref<32x1xf32, #tpu.memory_space<vmem>>, vector<32x1xf32>
    %11 = vector.broadcast %10 : vector<32x1xf32> to vector<32x128xf32>
    %12 = arith.addf %9, %11 : vector<32x128xf32>
    %cst_5 = arith.constant 0.000000e+00 : f32
    %13 = vector.broadcast %cst_5 : f32 to vector<32x128xf32>
    %14 = arith.maximumf %12, %13 : vector<32x128xf32>
    %15 = arith.truncf %14 : vector<32x128xf32> to vector<32x128xbf16>
    %c0_6 = arith.constant 0 : index
    %c0_7 = arith.constant 0 : index
    %16 = vector.load %arg4[%c0_6, %c0_7] : memref<32x128xbf16, #tpu.memory_space<vmem>>, vector<32x128xbf16>
    tpu.vector_store %arg4[%c0_6, %c0_7], %15 {strides = array<i32>} : memref<32x128xbf16, #tpu.memory_space<vmem>>, vector<32x128xbf16>,
    return
  }
  func.func @transform_0(%arg0: i32) -> (i32, i32) {
    %c0_i32 = arith.constant 0 : i32
    %c0_i32_0 = arith.constant 0 : i32
    %c0_i32_1 = arith.constant 0 : i32
    return %c0_i32, %c0_i32_0 : i32, i32
  }
  func.func @transform_1(%arg0: i32) -> (i32, i32) {
    %c0_i32 = arith.constant 0 : i32
    %c0_i32_0 = arith.constant 0 : i32
    %c0_i32_1 = arith.constant 0 : i32
    return %c0_i32, %c0_i32_0 : i32, i32
  }
  func.func @transform_2(%arg0: i32) -> (i32, i32) {
    %c0_i32 = arith.constant 0 : i32
    %c0_i32_0 = arith.constant 0 : i32
    return %c0_i32, %arg0 : i32, i32
  }
  func.func @transform_3(%arg0: i32) -> (i32, i32) {
    %c0_i32 = arith.constant 0 : i32
    %c0_i32_0 = arith.constant 0 : i32
    return %c0_i32, %arg0 : i32, i32
  }
}

module attributes {stable_mosaic.version = 11 : i64} {
  func.func @_fc_fused_kernel(%arg0: i32, %arg1: memref<2x2048xbf16, #tpu.memory_space<vmem>>, %arg2: memref<2048x128xbf16, #tpu.memory_space<vmem>>, %arg3: memref<1x128xf32, #tpu.memory_space<vmem>>, %arg4: memref<128x128xbf16, #tpu.memory_space<vmem>>, %arg5: memref<1x128xf32, #tpu.memory_space<vmem>>, %arg6: memref<2x128xf32, #tpu.memory_space<vmem>>) attributes {dimension_semantics = [#tpu.dimension_semantics<parallel>], iteration_bounds = array<i64: 1>, scalar_prefetch = 0 : i64, scratch_operands = 0 : i64, tpu.core_type = #tpu.core_type<tc>, window_params = [{transform_indices = @transform_0, window_bounds = array<i64: 2, 2048>}, {pipeline_mode = #tpu.pipeline_mode<synchronous>, transform_indices = @transform_1, window_bounds = array<i64: 2048, 128>}, {pipeline_mode = #tpu.pipeline_mode<synchronous>, transform_indices = @transform_2, window_bounds = array<i64: 1, 128>}, {pipeline_mode = #tpu.pipeline_mode<synchronous>, transform_indices = @transform_3, window_bounds = array<i64: 128, 128>}, {pipeline_mode = #tpu.pipeline_mode<synchronous>, transform_indices = @transform_4, window_bounds = array<i64: 1, 128>}, {transform_indices = @transform_5, window_bounds = array<i64: 2, 128>}]} {
    %c0 = arith.constant 0 : index
    %c0_0 = arith.constant 0 : index
    %0 = vector.load %arg1[%c0, %c0_0] : memref<2x2048xbf16, #tpu.memory_space<vmem>>, vector<2x2048xbf16>
    %c0_1 = arith.constant 0 : index
    %c0_2 = arith.constant 0 : index
    %1 = vector.load %arg2[%c0_1, %c0_2] : memref<2048x128xbf16, #tpu.memory_space<vmem>>, vector<2048x128xbf16>
    %cst = arith.constant dense<0.000000e+00> : vector<2x128xf32>
    %2 = tpu.matmul %0, %1, %cst {dimension_numbers = #tpu.dot_dimension_numbers<[1], [0], [0], [1], [0, 0, 1, 1], [], []>} : vector<2x2048xbf16>, vector<2048x128xbf16>, vector<2x128xf32> -> vector<2x128xf32>
    %c0_3 = arith.constant 0 : index
    %c0_4 = arith.constant 0 : index
    %3 = vector.load %arg3[%c0_3, %c0_4] : memref<1x128xf32, #tpu.memory_space<vmem>>, vector<1x128xf32>
    %4 = vector.broadcast %3 : vector<1x128xf32> to vector<2x128xf32>
    %5 = arith.addf %2, %4 : vector<2x128xf32>
    %cst_5 = arith.constant 0.000000e+00 : f32
    %6 = vector.broadcast %cst_5 : f32 to vector<2x128xf32>
    %7 = arith.maximumf %5, %6 : vector<2x128xf32>
    %8 = arith.truncf %7 : vector<2x128xf32> to vector<2x128xbf16>
    %c0_6 = arith.constant 0 : index
    %c0_7 = arith.constant 0 : index
    %9 = vector.load %arg4[%c0_6, %c0_7] : memref<128x128xbf16, #tpu.memory_space<vmem>>, vector<128x128xbf16>
    %cst_8 = arith.constant dense<0.000000e+00> : vector<2x128xf32>
    %10 = tpu.matmul %8, %9, %cst_8 {dimension_numbers = #tpu.dot_dimension_numbers<[1], [0], [0], [1], [0, 0, 1, 1], [], []>} : vector<2x128xbf16>, vector<128x128xbf16>, vector<2x128xf32> -> vector<2x128xf32>
    %c0_9 = arith.constant 0 : index
    %c0_10 = arith.constant 0 : index
    %11 = vector.load %arg5[%c0_9, %c0_10] : memref<1x128xf32, #tpu.memory_space<vmem>>, vector<1x128xf32>
    %12 = vector.broadcast %11 : vector<1x128xf32> to vector<2x128xf32>
    %13 = arith.addf %10, %12 : vector<2x128xf32>
    %c0_11 = arith.constant 0 : index
    %c0_12 = arith.constant 0 : index
    %14 = vector.load %arg6[%c0_11, %c0_12] : memref<2x128xf32, #tpu.memory_space<vmem>>, vector<2x128xf32>
    tpu.vector_store %arg6[%c0_11, %c0_12], %13 {strides = array<i32>} : memref<2x128xf32, #tpu.memory_space<vmem>>, vector<2x128xf32>,
    return
  }
  func.func @transform_0(%arg0: i32) -> (i32, i32) {
    %c0_i32 = arith.constant 0 : i32
    %c0_i32_0 = arith.constant 0 : i32
    return %arg0, %c0_i32 : i32, i32
  }
  func.func @transform_1(%arg0: i32) -> (i32, i32) {
    %c0_i32 = arith.constant 0 : i32
    %c0_i32_0 = arith.constant 0 : i32
    %c0_i32_1 = arith.constant 0 : i32
    return %c0_i32, %c0_i32_0 : i32, i32
  }
  func.func @transform_2(%arg0: i32) -> (i32, i32) {
    %c0_i32 = arith.constant 0 : i32
    %c0_i32_0 = arith.constant 0 : i32
    %c0_i32_1 = arith.constant 0 : i32
    return %c0_i32, %c0_i32_0 : i32, i32
  }
  func.func @transform_3(%arg0: i32) -> (i32, i32) {
    %c0_i32 = arith.constant 0 : i32
    %c0_i32_0 = arith.constant 0 : i32
    %c0_i32_1 = arith.constant 0 : i32
    return %c0_i32, %c0_i32_0 : i32, i32
  }
  func.func @transform_4(%arg0: i32) -> (i32, i32) {
    %c0_i32 = arith.constant 0 : i32
    %c0_i32_0 = arith.constant 0 : i32
    %c0_i32_1 = arith.constant 0 : i32
    return %c0_i32, %c0_i32_0 : i32, i32
  }
  func.func @transform_5(%arg0: i32) -> (i32, i32) {
    %c0_i32 = arith.constant 0 : i32
    %c0_i32_0 = arith.constant 0 : i32
    return %arg0, %c0_i32 : i32, i32
  }
}

</mosaic_0001>

<llo_original>
// kernel: simple_cnn_forward.3
$region0: #{simple_cnn_forward.3}
  #allocation0 [shape = 'u32[]', space=smem, size = 0x4, offset = 0x4, fixed_abs, tag = 'smem constant byte address 0x4 - core index']
  #allocation1 [shape = 'u32[72,128]{1,0:T(1,128)}', space=vmem, size = 0x9000, scoped, tag = 'internal scratch']
  %s0 = inlined_call_operand.vmem [shape: bf16[64,48], index: 0, kind: input, shape index: {}]
  %s1 = inlined_call_operand.vmem [shape: f32[16,1], index: 1, kind: input, shape index: {}]
  %s2 = inlined_call_operand.vmem [shape: bf16[48,512], index: 2, kind: input, shape index: {}]
  %s3 = inlined_call_operand.vmem [shape: bf16[16,512], index: 3, kind: output, shape index: {}]
  %s4 = sld [smem:[#allocation0]]
  $region117: #{simple_cnn_forward.3} parent=0
    _
  %s6 = ssub.s32 1, %s4
  %s7 = scalar_select 0, %s6, %s4
  $region1: #{simple_cnn_forward.3} parent=0
    #allocation2 [shape = 'u8[49152]{0}', space=vmem, size = 0xc000, scoped, tag = 'input window, operand 2']
    #allocation3 [shape = 'u8[16384]{0}', space=vmem, size = 0x4000, scoped, tag = 'output window, operand 0']
    loop: start=0, step=1, limit=4
    $region2: #{simple_cnn_forward.3} parent=1 // loop_pre_header
      _
    $region3: #{simple_cnn_forward.3} parent=1 // loop_header
      %s9 = sphi 0, %s13
      %p10 = scmp.ge.s32.totalorder %s9, 4
      %s17 = sphi 0, %s17
      %s19 = sphi 0, %s17
      %s20 = sphi 0, %s19
      %s34 = sphi 0, %s20
      %s38 = sphi 0, %s38
      %s40 = sphi 0, %s38
      %s41 = sphi 0, %s40
      %s55 = sphi 0, %s41
      %s61 = sphi 0, %s63
      %s64 = sphi 0, %s61
      %s65 = sphi 0, %s64
      %s81 = sphi 0, %s65
      %s87 = sphi 0, %s89
      %s90 = sphi 0, %s87
      %s91 = sphi 0, %s90
      %s107 = sphi 0, %s91
    $region4: #{simple_cnn_forward.3} parent=1 // loop_header_branch
      %12 = sbr.rel (%p10) target = $region8
    $region5: #{simple_cnn_forward.3} parent=1 // loop_body
      %s14 = ssub.s32 %s9, 1
      %s15 = ssub.s32 %s9, 2
      %s16 = sadd.s32 %s9, 1
      %s18 = sadd.s32 %s17, 1
      %p21 = scmp.eq.s32.totalorder %s9, 1
      %p22 = scmp.ne.s32.totalorder %s17, %s19
      %p23 = scmp.eq.s32.totalorder %s9, 0
      %p24 = por %p22, %p23
      %p25 = scmp.ne.s32.totalorder %s17, %s19
      %p26 = scmp.eq.s32.totalorder %s14, 1
      %p27 = por %p25, %p26
      %p28 = scmp.ne.s32.totalorder %s19, %s20
      %p29 = scmp.eq.s32.totalorder %s14, 0
      %p30 = por %p28, %p29
      %p31 = scmp.ne.s32.totalorder %s19, %s20
      %p32 = scmp.eq.s32.totalorder %s15, 1
      %p33 = por %p31, %p32
      %p35 = scmp.ne.s32.totalorder %s20, %s34
      %p36 = scmp.eq.s32.totalorder %s15, 0
      %p37 = por %p35, %p36
      %s39 = sadd.s32 %s38, 1
      %p42 = scmp.eq.s32.totalorder %s9, 1
      %p43 = scmp.ne.s32.totalorder %s38, %s40
      %p44 = scmp.eq.s32.totalorder %s9, 0
      %p45 = por %p43, %p44
      %p46 = scmp.ne.s32.totalorder %s38, %s40
      %p47 = scmp.eq.s32.totalorder %s14, 1
      %p48 = por %p46, %p47
      %p49 = scmp.ne.s32.totalorder %s40, %s41
      %p50 = scmp.eq.s32.totalorder %s14, 0
      %p51 = por %p49, %p50
      %p52 = scmp.ne.s32.totalorder %s40, %s41
      %p53 = scmp.eq.s32.totalorder %s15, 1
      %p54 = por %p52, %p53
      %p56 = scmp.ne.s32.totalorder %s41, %s55
      %p57 = scmp.eq.s32.totalorder %s15, 0
      %p58 = por %p56, %p57
      %s59 = ssub.s32 %s9, %s16
      %p60 = scmp.eq.s32.totalorder %s59, 0
      %s62 = sadd.s32 %s61, 1
      %s63 = scalar_select %p60, %s61, %s62
      %p66 = pneg %p60
      %p67 = scmp.eq.s32.totalorder %s9, 1
      %p68 = por %p66, %p67
      %p69 = scmp.ne.s32.totalorder %s61, %s64
      %p70 = scmp.eq.s32.totalorder %s9, 0
      %p71 = por %p69, %p70
      %p72 = scmp.ne.s32.totalorder %s61, %s64
      %p73 = scmp.eq.s32.totalorder %s14, 1
      %p74 = por %p72, %p73
      %p75 = scmp.ne.s32.totalorder %s64, %s65
      %p76 = scmp.eq.s32.totalorder %s14, 0
      %p77 = por %p75, %p76
      %p78 = scmp.ne.s32.totalorder %s64, %s65
      %p79 = scmp.eq.s32.totalorder %s15, 1
      %p80 = por %p78, %p79
      %p82 = scmp.ne.s32.totalorder %s65, %s81
      %p83 = scmp.eq.s32.totalorder %s15, 0
      %p84 = por %p82, %p83
      %s85 = ssub.s32 %s9, %s16
      %p86 = scmp.eq.s32.totalorder %s85, 0
      %s88 = sadd.s32 %s87, 1
      %s89 = scalar_select %p86, %s87, %s88
      %p92 = pneg %p86
      %p93 = scmp.eq.s32.totalorder %s9, 1
      %p94 = por %p92, %p93
      %p95 = scmp.ne.s32.totalorder %s87, %s90
      %p96 = scmp.eq.s32.totalorder %s9, 0
      %p97 = por %p95, %p96
      %p98 = scmp.ne.s32.totalorder %s87, %s90
      %p99 = scmp.eq.s32.totalorder %s14, 1
      %p100 = por %p98, %p99
      %p101 = scmp.ne.s32.totalorder %s90, %s91
      %p102 = scmp.eq.s32.totalorder %s14, 0
      %p103 = por %p101, %p102
      %p104 = scmp.ne.s32.totalorder %s90, %s91
      %p105 = scmp.eq.s32.totalorder %s15, 1
      %p106 = por %p104, %p105
      %p108 = scmp.ne.s32.totalorder %s91, %s107
      %p109 = scmp.eq.s32.totalorder %s15, 0
      %p110 = por %p108, %p109
      %p111 = scmp.le.s32.totalorder 1, %s9
      %p112 = scmp.lt.s32.totalorder %s9, 3
      %p113 = pnand %p111, %p112
      %p114 = pneg %p113
      // Predicated region
      $region9: #{simple_cnn_forward.3} parent=5 // pred_check
        _
      $region10: #{simple_cnn_forward.3} parent=5 // pred_check_branch
        %116 = sbr.rel (%p113) target = $region12
      $region11: #{simple_cnn_forward.3} parent=5 // pred_region
        %s117 = ssub.s32 %s9, 1
        // Predicated region
        $region13: #{simple_cnn_forward.3} parent=11 // pred_check
          %p118 = pneg %p30
        $region14: #{simple_cnn_forward.3} parent=11 // pred_check_branch
          %120 = sbr.rel (%p118) target = $region16
        $region15: #{simple_cnn_forward.3} parent=11 // pred_region
          _
        $region16: #{simple_cnn_forward.3} parent=11 // pred_fallthru
          _
        // Predicated region
        $region17: #{simple_cnn_forward.3} parent=11 // pred_check
          %p121 = pneg %p51
        $region18: #{simple_cnn_forward.3} parent=11 // pred_check_branch
          %123 = sbr.rel (%p121) target = $region20
        $region19: #{simple_cnn_forward.3} parent=11 // pred_region
          _
        $region20: #{simple_cnn_forward.3} parent=11 // pred_fallthru
          _
      $region12: #{simple_cnn_forward.3} parent=5 // pred_fallthru
        _
      %p124 = scmp.lt.s32.totalorder %s9, 2
      // Predicated region
      $region21: #{simple_cnn_forward.3} parent=5 // pred_check
        %p125 = pneg %p124
      $region22: #{simple_cnn_forward.3} parent=5 // pred_check_branch
        %127 = sbr.rel (%p125) target = $region24
      $region23: #{simple_cnn_forward.3} parent=5 // pred_region
        // Predicated region
        $region25: #{simple_cnn_forward.3} parent=23 // pred_check
          %p128 = pneg %p71
        $region26: #{simple_cnn_forward.3} parent=23 // pred_check_branch
          %130 = sbr.rel (%p128) target = $region28
        $region27: #{simple_cnn_forward.3} parent=23 // pred_region
          %s131 = sand.u32 %s61, 1
          %s132 = sand.u32 %s61, 1
          %s133 = smul.addr %s132, 48
          %s134 = scalar_lea.vmem [#allocation2], %s133
          %s135 = smul.u32 2, %s9
          %s136 = smul.addr %s135, 4
          %s137 = scalar_lea.vmem %s2, %s136
          // Predicated region
          $region29: #{simple_cnn_forward.3} parent=27 // pred_check
            _
          $region30: #{simple_cnn_forward.3} parent=27 // pred_check_branch
            %139 = sbr.rel (0) target = $region32
          $region31: #{simple_cnn_forward.3} parent=27 // pred_region
            // Predicated region
            $region33: #{simple_cnn_forward.3} parent=31 // pred_check
              _
            $region34: #{simple_cnn_forward.3} parent=31 // pred_check_branch
              %141 = sbr.rel (0) target = $region36
            $region35: #{simple_cnn_forward.3} parent=31 // pred_region
              // Predicated region
              $region48: #{simple_cnn_forward.3} parent=35 // pred_check
                _
              $region49: #{simple_cnn_forward.3} parent=35 // pred_check_branch
                %167 = sbr.rel (0) target = $region51
              $region50: #{simple_cnn_forward.3} parent=35 // pred_region
                loop: start=0, step=1, limit=1
                $region52: #{simple_cnn_forward.3} parent=50 // loop_pre_header
                  _
                $region53: #{simple_cnn_forward.3} parent=50 // loop_header
                  %s169 = sphi 0, %s173
                  %p170 = scmp.ge.s32.totalorder %s169, 1
                  %s174 = sphi %s137, %s137
                  %s175 = sphi %s134, %s134
                $region54: #{simple_cnn_forward.3} parent=50 // loop_header_branch
                  %172 = sbr.rel (%p170) target = $region58
                $region55: #{simple_cnn_forward.3} parent=50 // loop_body
                  %v176 = vld [vmem:[%s174] sm:$0xff]
                  %177 = vst [vmem:[%s175] sm:$0xff] %v176
                  %v178 = vld [vmem:[%s174 + $0x10] sm:$0xff]
                  %179 = vst [vmem:[%s175 + $0x8] sm:$0xff] %v178
                  %v180 = vld [vmem:[%s174 + $0x20] sm:$0xff]
                  %181 = vst [vmem:[%s175 + $0x10] sm:$0xff] %v180
                  %v182 = vld [vmem:[%s174 + $0x30] sm:$0xff]
                  %183 = vst [vmem:[%s175 + $0x18] sm:$0xff] %v182
                  %v184 = vld [vmem:[%s174 + $0x40] sm:$0xff]
                  %185 = vst [vmem:[%s175 + $0x20] sm:$0xff] %v184
                  %v186 = vld [vmem:[%s174 + $0x50] sm:$0xff]
                  %187 = vst [vmem:[%s175 + $0x28] sm:$0xff] %v186
                $region56: #{simple_cnn_forward.3} parent=50 // loop_footer
                  %s173 = sadd.s32 1, %s169
                $region57: #{simple_cnn_forward.3} parent=50 // loop_footer_branch
                  %168 = sbr.rel target = $region53
                $region58: #{simple_cnn_forward.3} parent=50 // loop_exit
                  _
              $region51: #{simple_cnn_forward.3} parent=35 // pred_fallthru
                _
              // Predicated region
              $region59: #{simple_cnn_forward.3} parent=35 // pred_check
                _
              $region60: #{simple_cnn_forward.3} parent=35 // pred_check_branch
                %189 = sbr.rel target = $region62
              $region61: #{simple_cnn_forward.3} parent=35 // pred_region
                _
              $region62: #{simple_cnn_forward.3} parent=35 // pred_fallthru
                _
            $region36: #{simple_cnn_forward.3} parent=31 // pred_fallthru
              _
            // Predicated region
            $region37: #{simple_cnn_forward.3} parent=31 // pred_check
              _
            $region38: #{simple_cnn_forward.3} parent=31 // pred_check_branch
              %143 = sbr.rel target = $region40
            $region39: #{simple_cnn_forward.3} parent=31 // pred_region
              %s145 = ssub.s32 256, 1
              loop: start=0, step=1, limit=1
              $region41: #{simple_cnn_forward.3} parent=39 // loop_pre_header
                _
              $region42: #{simple_cnn_forward.3} parent=39 // loop_header
                %s147 = sphi 0, %s151
                %p148 = scmp.ge.s32.totalorder %s147, 1
                %s152 = sphi %s137, %s137
                %s153 = sphi %s134, %s134
              $region43: #{simple_cnn_forward.3} parent=39 // loop_header_branch
                %150 = sbr.rel (%p148) target = $region47
              $region44: #{simple_cnn_forward.3} parent=39 // loop_body
                %v154 = vld [vmem:[%s152] sm:%s145]
                %155 = vst [vmem:[%s153] sm:%s145] %v154
                %v156 = vld [vmem:[%s152 + $0x10] sm:%s145]
                %157 = vst [vmem:[%s153 + $0x8] sm:%s145] %v156
                %v158 = vld [vmem:[%s152 + $0x20] sm:%s145]
                %159 = vst [vmem:[%s153 + $0x10] sm:%s145] %v158
                %v160 = vld [vmem:[%s152 + $0x30] sm:%s145]
                %161 = vst [vmem:[%s153 + $0x18] sm:%s145] %v160
                %v162 = vld [vmem:[%s152 + $0x40] sm:%s145]
                %163 = vst [vmem:[%s153 + $0x20] sm:%s145] %v162
                %v164 = vld [vmem:[%s152 + $0x50] sm:%s145]
                %165 = vst [vmem:[%s153 + $0x28] sm:%s145] %v164
              $region45: #{simple_cnn_forward.3} parent=39 // loop_footer
                %s151 = sadd.s32 1, %s147
              $region46: #{simple_cnn_forward.3} parent=39 // loop_footer_branch
                %146 = sbr.rel target = $region42
              $region47: #{simple_cnn_forward.3} parent=39 // loop_exit
                _
            $region40: #{simple_cnn_forward.3} parent=31 // pred_fallthru
              _
          $region32: #{simple_cnn_forward.3} parent=27 // pred_fallthru
            _
          %190 = vnop
        $region28: #{simple_cnn_forward.3} parent=23 // pred_fallthru
          _
      $region24: #{simple_cnn_forward.3} parent=5 // pred_fallthru
        _
      %p191 = scmp.le.s32.totalorder 1, %s9
      %p192 = scmp.lt.s32.totalorder %s9, 3
      %p193 = pnand %p191, %p192
      %p194 = pneg %p193
      // Predicated region
      $region63: #{simple_cnn_forward.3} parent=5 // pred_check
        _
      $region64: #{simple_cnn_forward.3} parent=5 // pred_check_branch
        %196 = sbr.rel (%p193) target = $region66
      $region65: #{simple_cnn_forward.3} parent=5 // pred_region
        %s197 = ssub.s32 %s9, 1
        %s198 = sand.u32 %s64, 1
        %s199 = sand.u32 %s64, 1
        %s200 = smul.addr %s199, 48
        %s201 = scalar_lea.vmem [#allocation2], %s200
        // Predicated region
        $region67: #{simple_cnn_forward.3} parent=65 // pred_check
          %p202 = pneg %p77
        $region68: #{simple_cnn_forward.3} parent=65 // pred_check_branch
          %204 = sbr.rel (%p202) target = $region70
        $region69: #{simple_cnn_forward.3} parent=65 // pred_region
          _
        $region70: #{simple_cnn_forward.3} parent=65 // pred_fallthru
          _
        %p205 = pneg %p30
        %p206 = pneg %p27
        %p207 = pneg %p51
        %p208 = pneg %p48
        %s209 = sand.u32 %s64, 1
        %s210 = sand.u32 %s64, 1
        %s211 = smul.addr %s210, 48
        %s212 = scalar_lea.vmem [#allocation2], %s211
        %p213 = pneg %p77
        %p214 = pneg %p74
        %p215 = pneg %p103
        %p216 = pneg %p100
        %s217 = sand.u32 %s90, 1
        %s218 = sand.u32 %s90, 1
        %s219 = smul.addr %s218, 16
        %s220 = scalar_lea.vmem [#allocation3], %s219
        %s221 = smul.u32 2, %s14
        %s222 = smul.u32 2, %s14
        %v224 = vld [vmem:[%s0] sm:$0xf]
        %v225 = vld [vmem:[%s0 + $0x4] sm:$0xf]
        %v226 = vld [vmem:[%s0 + $0x8] sm:$0xf]
        %v227 = vld [vmem:[%s0 + $0xc] sm:$0xf]
        %v228 = vld [vmem:[%s0 + $0x10] sm:$0xf]
        %v229 = vld [vmem:[%s0 + $0x14] sm:$0xf]
        %v230 = vld [vmem:[%s0 + $0x18] sm:$0xf]
        %v231 = vld [vmem:[%s0 + $0x1c] sm:$0xf]
        %v232 = vld [vmem:[%s201] sm:$0xff]
        %v233 = vld [vmem:[%s201 + $0x8] sm:$0xff]
        %v234 = vld [vmem:[%s201 + $0x10] sm:$0xff]
        %v235 = vld [vmem:[%s201 + $0x18] sm:$0xff]
        %v236 = vld [vmem:[%s201 + $0x20] sm:$0xff]
        %v237 = vld [vmem:[%s201 + $0x28] sm:$0xff]
        %v246 = vunpack.c.l.b16 %v224
        %v247 = vunpack.c.l.b16 %v225
        %v248 = vunpack.c.l.b16 %v226
        %v249 = vunpack.c.l.b16 %v227
        %v250 = vunpack.c.l.b16 %v228
        %v251 = vunpack.c.l.b16 %v229
        %v252 = vunpack.c.l.b16 %v230
        %v253 = vunpack.c.l.b16 %v231
        %v254 = vpack.c.b16 %v247, %v246
        %v255 = vpack.c.b16 %v249, %v248
        %v256 = vpack.c.b16 %v251, %v250
        %v257 = vpack.c.b16 %v253, %v252
        %v264 = vunpack.c.l.b16 %v232
        %v265 = vunpack.c.h.b16 %v232
        %v266 = vunpack.c.l.b16 %v233
        %v267 = vunpack.c.h.b16 %v233
        %v268 = vunpack.c.l.b16 %v234
        %v269 = vunpack.c.h.b16 %v234
        %v270 = vunpack.c.l.b16 %v235
        %v271 = vunpack.c.h.b16 %v235
        %v272 = vunpack.c.l.b16 %v236
        %v273 = vunpack.c.h.b16 %v236
        %v274 = vunpack.c.l.b16 %v237
        %v275 = vunpack.c.h.b16 %v237
        %v276 = vpack.c.b16 %v266, %v264
        %v277 = vpack.c.b16 %v267, %v265
        %v278 = vpack.c.b16 %v270, %v268
        %v279 = vpack.c.b16 %v271, %v269
        %v280 = vpack.c.b16 %v274, %v272
        %v281 = vpack.c.b16 %v275, %v273
        %vm288 = vcmask 392192
        %v290 = vsel %vm288, %v254, 0
        %v293 = vsel %vm288, %v255, 0
        %v296 = vsel %vm288, %v256, 0
        %v299 = vsel %vm288, %v257, 0
        %301 = vmatpush.bf16.msra.mxu0 0
        %302 = vmatpush.bf16.msra.mxu0 0
        %303 = vmatpush.bf16.msra.mxu0 0
        %304 = vmatpush.bf16.msra.mxu0 0
        %305 = vmatpush.bf16.msra.mxu0 0
        %306 = vmatpush.bf16.msra.mxu0 %v280
        %307 = vmatpush.bf16.msra.mxu0 %v278
        %308 = vmatpush.bf16.msra.mxu0 %v276
        %309 = vmatmul.bf16.gmra.mxu0 %v290
        %v310 = vpop.f32.mrf.mxu0
        %v311 = vadd.f32 0.0, %v310
        %v312 = vpop.f32.mrf.mxu0
        %v313 = vadd.f32 0.0, %v312
        %314 = vmatmul.bf16.gmra.mxu0 %v293
        %v315 = vpop.f32.mrf.mxu0
        %v316 = vadd.f32 0.0, %v315
        %v317 = vpop.f32.mrf.mxu0
        %v318 = vadd.f32 0.0, %v317
        %319 = vmatmul.bf16.gmra.mxu0 %v296
        %v320 = vpop.f32.mrf.mxu0
        %v321 = vadd.f32 0.0, %v320
        %v322 = vpop.f32.mrf.mxu0
        %v323 = vadd.f32 0.0, %v322
        %324 = vmatmul.bf16.gmra.mxu0 %v299
        %v325 = vpop.f32.mrf.mxu0
        %v326 = vadd.f32 0.0, %v325
        %v327 = vpop.f32.mrf.mxu0
        %v328 = vadd.f32 0.0, %v327
        %329 = vdwg.mxu0
        %330 = vmatpush.bf16.msra.mxu0 0
        %331 = vmatpush.bf16.msra.mxu0 0
        %332 = vmatpush.bf16.msra.mxu0 0
        %333 = vmatpush.bf16.msra.mxu0 0
        %334 = vmatpush.bf16.msra.mxu0 0
        %335 = vmatpush.bf16.msra.mxu0 %v281
        %336 = vmatpush.bf16.msra.mxu0 %v279
        %337 = vmatpush.bf16.msra.mxu0 %v277
        %338 = vmatmul.bf16.gmra.mxu0 %v290
        %v339 = vpop.f32.mrf.mxu0
        %v340 = vadd.f32 0.0, %v339
        %v341 = vpop.f32.mrf.mxu0
        %v342 = vadd.f32 0.0, %v341
        %343 = vmatmul.bf16.gmra.mxu0 %v293
        %v344 = vpop.f32.mrf.mxu0
        %v345 = vadd.f32 0.0, %v344
        %v346 = vpop.f32.mrf.mxu0
        %v347 = vadd.f32 0.0, %v346
        %348 = vmatmul.bf16.gmra.mxu0 %v296
        %v349 = vpop.f32.mrf.mxu0
        %v350 = vadd.f32 0.0, %v349
        %v351 = vpop.f32.mrf.mxu0
        %v352 = vadd.f32 0.0, %v351
        %353 = vmatmul.bf16.gmra.mxu0 %v299
        %v354 = vpop.f32.mrf.mxu0
        %v355 = vadd.f32 0.0, %v354
        %v356 = vpop.f32.mrf.mxu0
        %v357 = vadd.f32 0.0, %v356
        %358 = vdwg.mxu0
        %v359 = vmax.f32 %v311, %v316
        %v360 = vmax.f32 %v340, %v345
        %v361 = vmax.f32 %v313, %v318
        %v362 = vmax.f32 %v342, %v347
        %v363 = vmax.f32 %v321, %v326
        %v364 = vmax.f32 %v350, %v355
        %v365 = vmax.f32 %v323, %v328
        %v366 = vmax.f32 %v352, %v357
        %v367 = vmax.f32 %v359, %v363
        %v368 = vmax.f32 %v360, %v364
        %v369 = vmax.f32 %v361, %v365
        %v370 = vmax.f32 %v362, %v366
        %v371 = vld [vmem:[%s1] sm:$0xff]
        %v372 = vld [vmem:[%s1 + $0x8] sm:$0xff]
        %374 = vset.pattern.permute.xlu0 0
        %375 = vperm.xlu0 %374, %v371
        %v376 = vpop.permute.xlu0 %375
        %379 = vset.pattern.permute.xlu0 0
        %380 = vperm.xlu0 %379, %v372
        %v381 = vpop.permute.xlu0 %380
        %v383 = vadd.f32 %v367, %v376
        %v384 = vadd.f32 %v368, %v376
        %v385 = vadd.f32 %v369, %v381
        %v386 = vadd.f32 %v370, %v381
        %v387 = vmax.f32 %v383, 0.0
        %v388 = vmax.f32 %v384, 0.0
        %v389 = vmax.f32 %v385, 0.0
        %v390 = vmax.f32 %v386, 0.0
        %v391 = vpack.c.bf16 %v388, %v387
        %v392 = vpack.c.bf16 %v390, %v389
        %393 = vst [vmem:[%s220] sm:$0xff] %v391
        %394 = vst [vmem:[%s220 + $0x8] sm:$0xff] %v392
        %s395 = sand.u32 %s90, 1
        %s396 = sand.u32 %s90, 1
        %s397 = smul.addr %s396, 16
        %s398 = scalar_lea.vmem [#allocation3], %s397
        // Predicated region
        $region71: #{simple_cnn_forward.3} parent=65 // pred_check
          %p399 = pneg %p100
        $region72: #{simple_cnn_forward.3} parent=65 // pred_check_branch
          %401 = sbr.rel (%p399) target = $region74
        $region73: #{simple_cnn_forward.3} parent=65 // pred_region
          %s402 = smul.u32 2, %s14
          %s403 = smul.addr %s402, 4
          %s404 = scalar_lea.vmem %s3, %s403
          // Predicated region
          $region75: #{simple_cnn_forward.3} parent=73 // pred_check
            _
          $region76: #{simple_cnn_forward.3} parent=73 // pred_check_branch
            %406 = sbr.rel (0) target = $region78
          $region77: #{simple_cnn_forward.3} parent=73 // pred_region
            // Predicated region
            $region79: #{simple_cnn_forward.3} parent=77 // pred_check
              _
            $region80: #{simple_cnn_forward.3} parent=77 // pred_check_branch
              %408 = sbr.rel (0) target = $region82
            $region81: #{simple_cnn_forward.3} parent=77 // pred_region
              // Predicated region
              $region94: #{simple_cnn_forward.3} parent=81 // pred_check
                _
              $region95: #{simple_cnn_forward.3} parent=81 // pred_check_branch
                %426 = sbr.rel (0) target = $region97
              $region96: #{simple_cnn_forward.3} parent=81 // pred_region
                loop: start=0, step=1, limit=1
                $region98: #{simple_cnn_forward.3} parent=96 // loop_pre_header
                  _
                $region99: #{simple_cnn_forward.3} parent=96 // loop_header
                  %s428 = sphi 0, %s432
                  %p429 = scmp.ge.s32.totalorder %s428, 1
                  %s433 = sphi %s398, %s398
                  %s434 = sphi %s404, %s404
                $region100: #{simple_cnn_forward.3} parent=96 // loop_header_branch
                  %431 = sbr.rel (%p429) target = $region104
                $region101: #{simple_cnn_forward.3} parent=96 // loop_body
                  %v435 = vld [vmem:[%s433] sm:$0xff]
                  %436 = vst [vmem:[%s434] sm:$0xff] %v435
                  %v437 = vld [vmem:[%s433 + $0x8] sm:$0xff]
                  %438 = vst [vmem:[%s434 + $0x10] sm:$0xff] %v437
                $region102: #{simple_cnn_forward.3} parent=96 // loop_footer
                  %s432 = sadd.s32 1, %s428
                $region103: #{simple_cnn_forward.3} parent=96 // loop_footer_branch
                  %427 = sbr.rel target = $region99
                $region104: #{simple_cnn_forward.3} parent=96 // loop_exit
                  _
              $region97: #{simple_cnn_forward.3} parent=81 // pred_fallthru
                _
              // Predicated region
              $region105: #{simple_cnn_forward.3} parent=81 // pred_check
                _
              $region106: #{simple_cnn_forward.3} parent=81 // pred_check_branch
                %440 = sbr.rel target = $region108
              $region107: #{simple_cnn_forward.3} parent=81 // pred_region
                _
              $region108: #{simple_cnn_forward.3} parent=81 // pred_fallthru
                _
            $region82: #{simple_cnn_forward.3} parent=77 // pred_fallthru
              _
            // Predicated region
            $region83: #{simple_cnn_forward.3} parent=77 // pred_check
              _
            $region84: #{simple_cnn_forward.3} parent=77 // pred_check_branch
              %410 = sbr.rel target = $region86
            $region85: #{simple_cnn_forward.3} parent=77 // pred_region
              %s412 = ssub.s32 256, 1
              loop: start=0, step=1, limit=1
              $region87: #{simple_cnn_forward.3} parent=85 // loop_pre_header
                _
              $region88: #{simple_cnn_forward.3} parent=85 // loop_header
                %s414 = sphi 0, %s418
                %p415 = scmp.ge.s32.totalorder %s414, 1
                %s419 = sphi %s398, %s398
                %s420 = sphi %s404, %s404
              $region89: #{simple_cnn_forward.3} parent=85 // loop_header_branch
                %417 = sbr.rel (%p415) target = $region93
              $region90: #{simple_cnn_forward.3} parent=85 // loop_body
                %v421 = vld [vmem:[%s419] sm:%s412]
                %422 = vst [vmem:[%s420] sm:%s412] %v421
                %v423 = vld [vmem:[%s419 + $0x8] sm:%s412]
                %424 = vst [vmem:[%s420 + $0x10] sm:%s412] %v423
              $region91: #{simple_cnn_forward.3} parent=85 // loop_footer
                %s418 = sadd.s32 1, %s414
              $region92: #{simple_cnn_forward.3} parent=85 // loop_footer_branch
                %413 = sbr.rel target = $region88
              $region93: #{simple_cnn_forward.3} parent=85 // loop_exit
                _
            $region86: #{simple_cnn_forward.3} parent=77 // pred_fallthru
              _
          $region78: #{simple_cnn_forward.3} parent=73 // pred_fallthru
            _
          %441 = vnop
        $region74: #{simple_cnn_forward.3} parent=65 // pred_fallthru
          _
      $region66: #{simple_cnn_forward.3} parent=5 // pred_fallthru
        _
      %p442 = scmp.le.s32.totalorder 2, %s9
      // Predicated region
      $region109: #{simple_cnn_forward.3} parent=5 // pred_check
        %p443 = pneg %p442
      $region110: #{simple_cnn_forward.3} parent=5 // pred_check_branch
        %445 = sbr.rel (%p443) target = $region112
      $region111: #{simple_cnn_forward.3} parent=5 // pred_region
        %s446 = ssub.s32 %s9, 2
        // Predicated region
        $region113: #{simple_cnn_forward.3} parent=111 // pred_check
          %p447 = pneg %p106
        $region114: #{simple_cnn_forward.3} parent=111 // pred_check_branch
          %449 = sbr.rel (%p447) target = $region116
        $region115: #{simple_cnn_forward.3} parent=111 // pred_region
          %s450 = sand.u32 %s91, 1
          %s451 = sand.u32 %s91, 1
          %s452 = smul.addr %s451, 16
          %s453 = scalar_lea.vmem [#allocation3], %s452
        $region116: #{simple_cnn_forward.3} parent=111 // pred_fallthru
          _
      $region112: #{simple_cnn_forward.3} parent=5 // pred_fallthru
        _
    $region6: #{simple_cnn_forward.3} parent=1 // loop_footer
      %s13 = sadd.s32 1, %s9
    $region7: #{simple_cnn_forward.3} parent=1 // loop_footer_branch
      %8 = sbr.rel target = $region3
    $region8: #{simple_cnn_forward.3} parent=1 // loop_exit
      _

// kernel: simple_cnn_forward.4
$region0: #{simple_cnn_forward.4}
  #allocation0 [shape = 'u32[]', space=smem, size = 0x4, offset = 0x4, fixed_abs, tag = 'smem constant byte address 0x4 - core index']
  #allocation1 [shape = 'u32[72,128]{1,0:T(1,128)}', space=vmem, size = 0x9000, scoped, tag = 'internal scratch']
  %s0 = inlined_call_operand.vmem [shape: bf16[128,256], index: 0, kind: input, shape index: {}]
  %s1 = inlined_call_operand.vmem [shape: f32[32,1], index: 1, kind: input, shape index: {}]
  %s2 = inlined_call_operand.vmem [shape: bf16[256,128], index: 2, kind: input, shape index: {}]
  %s3 = inlined_call_operand.vmem [shape: bf16[32,128], index: 3, kind: output, shape index: {}]
  %s4 = sld [smem:[#allocation0]]
  $region22: #{simple_cnn_forward.4} parent=0
    _
  %s6 = ssub.s32 1, %s4
  %s7 = scalar_select 0, %s6, %s4
  // Predicated region
  $region2: #{simple_cnn_forward.4} parent=0 // pred_check
    _
  $region3: #{simple_cnn_forward.4} parent=0 // pred_check_branch
    %9 = sbr.rel (0) target = $region5
  $region4: #{simple_cnn_forward.4} parent=0 // pred_region
    _
  $region5: #{simple_cnn_forward.4} parent=0 // pred_fallthru
    _
  // Predicated region
  $region6: #{simple_cnn_forward.4} parent=0 // pred_check
    _
  $region7: #{simple_cnn_forward.4} parent=0 // pred_check_branch
    %11 = sbr.rel (0) target = $region9
  $region8: #{simple_cnn_forward.4} parent=0 // pred_region
    _
  $region9: #{simple_cnn_forward.4} parent=0 // pred_fallthru
    _
  // Predicated region
  $region10: #{simple_cnn_forward.4} parent=0 // pred_check
    _
  $region11: #{simple_cnn_forward.4} parent=0 // pred_check_branch
    %13 = sbr.rel (0) target = $region13
  $region12: #{simple_cnn_forward.4} parent=0 // pred_region
    _
  $region13: #{simple_cnn_forward.4} parent=0 // pred_fallthru
    _
  %v14 = vld [vmem:[%s0] sm:$0xff]
  %v15 = vld [vmem:[%s0 + $0x8] sm:$0xff]
  %v16 = vld [vmem:[%s0 + $0x10] sm:$0xff]
  %v17 = vld [vmem:[%s0 + $0x18] sm:$0xff]
  %v18 = vld [vmem:[%s0 + $0x20] sm:$0xff]
  %v19 = vld [vmem:[%s0 + $0x28] sm:$0xff]
  %v20 = vld [vmem:[%s0 + $0x30] sm:$0xff]
  %v21 = vld [vmem:[%s0 + $0x38] sm:$0xff]
  %v22 = vld [vmem:[%s0 + $0x40] sm:$0xff]
  %v23 = vld [vmem:[%s0 + $0x48] sm:$0xff]
  %v24 = vld [vmem:[%s0 + $0x50] sm:$0xff]
  %v25 = vld [vmem:[%s0 + $0x58] sm:$0xff]
  %v26 = vld [vmem:[%s0 + $0x60] sm:$0xff]
  %v27 = vld [vmem:[%s0 + $0x68] sm:$0xff]
  %v28 = vld [vmem:[%s0 + $0x70] sm:$0xff]
  %v29 = vld [vmem:[%s0 + $0x78] sm:$0xff]
  %v30 = vld [vmem:[%s2] sm:$0xf]
  %v31 = vld [vmem:[%s2 + $0x4] sm:$0xf]
  %v32 = vld [vmem:[%s2 + $0x8] sm:$0xf]
  %v33 = vld [vmem:[%s2 + $0xc] sm:$0xf]
  %v34 = vld [vmem:[%s2 + $0x10] sm:$0xf]
  %v35 = vld [vmem:[%s2 + $0x14] sm:$0xf]
  %v36 = vld [vmem:[%s2 + $0x18] sm:$0xf]
  %v37 = vld [vmem:[%s2 + $0x1c] sm:$0xf]
  %v38 = vld [vmem:[%s2 + $0x20] sm:$0xf]
  %v39 = vld [vmem:[%s2 + $0x24] sm:$0xf]
  %v40 = vld [vmem:[%s2 + $0x28] sm:$0xf]
  %v41 = vld [vmem:[%s2 + $0x2c] sm:$0xf]
  %v42 = vld [vmem:[%s2 + $0x30] sm:$0xf]
  %v43 = vld [vmem:[%s2 + $0x34] sm:$0xf]
  %v44 = vld [vmem:[%s2 + $0x38] sm:$0xf]
  %v45 = vld [vmem:[%s2 + $0x3c] sm:$0xf]
  %v46 = vld [vmem:[%s2 + $0x40] sm:$0xf]
  %v47 = vld [vmem:[%s2 + $0x44] sm:$0xf]
  %v48 = vld [vmem:[%s2 + $0x48] sm:$0xf]
  %v49 = vld [vmem:[%s2 + $0x4c] sm:$0xf]
  %v50 = vld [vmem:[%s2 + $0x50] sm:$0xf]
  %v51 = vld [vmem:[%s2 + $0x54] sm:$0xf]
  %v52 = vld [vmem:[%s2 + $0x58] sm:$0xf]
  %v53 = vld [vmem:[%s2 + $0x5c] sm:$0xf]
  %v54 = vld [vmem:[%s2 + $0x60] sm:$0xf]
  %v55 = vld [vmem:[%s2 + $0x64] sm:$0xf]
  %v56 = vld [vmem:[%s2 + $0x68] sm:$0xf]
  %v57 = vld [vmem:[%s2 + $0x6c] sm:$0xf]
  %v58 = vld [vmem:[%s2 + $0x70] sm:$0xf]
  %v59 = vld [vmem:[%s2 + $0x74] sm:$0xf]
  %v60 = vld [vmem:[%s2 + $0x78] sm:$0xf]
  %v61 = vld [vmem:[%s2 + $0x7c] sm:$0xf]
  %v78 = vunpack.c.l.b16 %v14
  %v79 = vunpack.c.h.b16 %v14
  %v80 = vunpack.c.l.b16 %v15
  %v81 = vunpack.c.h.b16 %v15
  %v82 = vunpack.c.l.b16 %v16
  %v83 = vunpack.c.h.b16 %v16
  %v84 = vunpack.c.l.b16 %v17
  %v85 = vunpack.c.h.b16 %v17
  %v86 = vunpack.c.l.b16 %v18
  %v87 = vunpack.c.h.b16 %v18
  %v88 = vunpack.c.l.b16 %v19
  %v89 = vunpack.c.h.b16 %v19
  %v90 = vunpack.c.l.b16 %v20
  %v91 = vunpack.c.h.b16 %v20
  %v92 = vunpack.c.l.b16 %v21
  %v93 = vunpack.c.h.b16 %v21
  %v94 = vunpack.c.l.b16 %v22
  %v95 = vunpack.c.h.b16 %v22
  %v96 = vunpack.c.l.b16 %v23
  %v97 = vunpack.c.h.b16 %v23
  %v98 = vunpack.c.l.b16 %v24
  %v99 = vunpack.c.h.b16 %v24
  %v100 = vunpack.c.l.b16 %v25
  %v101 = vunpack.c.h.b16 %v25
  %v102 = vunpack.c.l.b16 %v26
  %v103 = vunpack.c.h.b16 %v26
  %v104 = vunpack.c.l.b16 %v27
  %v105 = vunpack.c.h.b16 %v27
  %v106 = vunpack.c.l.b16 %v28
  %v107 = vunpack.c.h.b16 %v28
  %v108 = vunpack.c.l.b16 %v29
  %v109 = vunpack.c.h.b16 %v29
  %v110 = vpack.c.b16 %v80, %v78
  %v111 = vpack.c.b16 %v81, %v79
  %v112 = vpack.c.b16 %v84, %v82
  %v113 = vpack.c.b16 %v85, %v83
  %v114 = vpack.c.b16 %v88, %v86
  %v115 = vpack.c.b16 %v89, %v87
  %v116 = vpack.c.b16 %v92, %v90
  %v117 = vpack.c.b16 %v93, %v91
  %v118 = vpack.c.b16 %v96, %v94
  %v119 = vpack.c.b16 %v97, %v95
  %v120 = vpack.c.b16 %v100, %v98
  %v121 = vpack.c.b16 %v101, %v99
  %v122 = vpack.c.b16 %v104, %v102
  %v123 = vpack.c.b16 %v105, %v103
  %v124 = vpack.c.b16 %v108, %v106
  %v125 = vpack.c.b16 %v109, %v107
  %v174 = vunpack.c.l.b16 %v30
  %v175 = vunpack.c.l.b16 %v31
  %v176 = vunpack.c.l.b16 %v32
  %v177 = vunpack.c.l.b16 %v33
  %v178 = vunpack.c.l.b16 %v34
  %v179 = vunpack.c.l.b16 %v35
  %v180 = vunpack.c.l.b16 %v36
  %v181 = vunpack.c.l.b16 %v37
  %v182 = vunpack.c.l.b16 %v38
  %v183 = vunpack.c.l.b16 %v39
  %v184 = vunpack.c.l.b16 %v40
  %v185 = vunpack.c.l.b16 %v41
  %v186 = vunpack.c.l.b16 %v42
  %v187 = vunpack.c.l.b16 %v43
  %v188 = vunpack.c.l.b16 %v44
  %v189 = vunpack.c.l.b16 %v45
  %v190 = vunpack.c.l.b16 %v46
  %v191 = vunpack.c.l.b16 %v47
  %v192 = vunpack.c.l.b16 %v48
  %v193 = vunpack.c.l.b16 %v49
  %v194 = vunpack.c.l.b16 %v50
  %v195 = vunpack.c.l.b16 %v51
  %v196 = vunpack.c.l.b16 %v52
  %v197 = vunpack.c.l.b16 %v53
  %v198 = vunpack.c.l.b16 %v54
  %v199 = vunpack.c.l.b16 %v55
  %v200 = vunpack.c.l.b16 %v56
  %v201 = vunpack.c.l.b16 %v57
  %v202 = vunpack.c.l.b16 %v58
  %v203 = vunpack.c.l.b16 %v59
  %v204 = vunpack.c.l.b16 %v60
  %v205 = vunpack.c.l.b16 %v61
  %v206 = vpack.c.b16 %v175, %v174
  %v207 = vpack.c.b16 %v177, %v176
  %v208 = vpack.c.b16 %v179, %v178
  %v209 = vpack.c.b16 %v181, %v180
  %v210 = vpack.c.b16 %v183, %v182
  %v211 = vpack.c.b16 %v185, %v184
  %v212 = vpack.c.b16 %v187, %v186
  %v213 = vpack.c.b16 %v189, %v188
  %v214 = vpack.c.b16 %v191, %v190
  %v215 = vpack.c.b16 %v193, %v192
  %v216 = vpack.c.b16 %v195, %v194
  %v217 = vpack.c.b16 %v197, %v196
  %v218 = vpack.c.b16 %v199, %v198
  %v219 = vpack.c.b16 %v201, %v200
  %v220 = vpack.c.b16 %v203, %v202
  %v221 = vpack.c.b16 %v205, %v204
  %238 = vmatpush.bf16.msra.mxu0 %v213
  %239 = vmatpush.bf16.msra.mxu0 %v212
  %240 = vmatpush.bf16.msra.mxu0 %v211
  %241 = vmatpush.bf16.msra.mxu0 %v210
  %242 = vmatpush.bf16.msra.mxu0 %v209
  %243 = vmatpush.bf16.msra.mxu0 %v208
  %244 = vmatpush.bf16.msra.mxu0 %v207
  %245 = vmatpush.bf16.msra.mxu0 %v206
  %246 = vmatmul.bf16.gmra.mxu0 %v110
  %v247 = vpop.f32.mrf.mxu0
  %v248 = vadd.f32 0.0, %v247
  %v249 = vpop.f32.mrf.mxu0
  %v250 = vadd.f32 0.0, %v249
  %251 = vmatmul.bf16.gmra.mxu0 %v112
  %v252 = vpop.f32.mrf.mxu0
  %v253 = vadd.f32 0.0, %v252
  %v254 = vpop.f32.mrf.mxu0
  %v255 = vadd.f32 0.0, %v254
  %256 = vmatmul.bf16.gmra.mxu0 %v114
  %v257 = vpop.f32.mrf.mxu0
  %v258 = vadd.f32 0.0, %v257
  %v259 = vpop.f32.mrf.mxu0
  %v260 = vadd.f32 0.0, %v259
  %261 = vmatmul.bf16.gmra.mxu0 %v116
  %v262 = vpop.f32.mrf.mxu0
  %v263 = vadd.f32 0.0, %v262
  %v264 = vpop.f32.mrf.mxu0
  %v265 = vadd.f32 0.0, %v264
  %266 = vmatmul.bf16.gmra.mxu0 %v118
  %v267 = vpop.f32.mrf.mxu0
  %v268 = vadd.f32 0.0, %v267
  %v269 = vpop.f32.mrf.mxu0
  %v270 = vadd.f32 0.0, %v269
  %271 = vmatmul.bf16.gmra.mxu0 %v120
  %v272 = vpop.f32.mrf.mxu0
  %v273 = vadd.f32 0.0, %v272
  %v274 = vpop.f32.mrf.mxu0
  %v275 = vadd.f32 0.0, %v274
  %276 = vmatmul.bf16.gmra.mxu0 %v122
  %v277 = vpop.f32.mrf.mxu0
  %v278 = vadd.f32 0.0, %v277
  %v279 = vpop.f32.mrf.mxu0
  %v280 = vadd.f32 0.0, %v279
  %281 = vmatmul.bf16.gmra.mxu0 %v124
  %v282 = vpop.f32.mrf.mxu0
  %v283 = vadd.f32 0.0, %v282
  %v284 = vpop.f32.mrf.mxu0
  %v285 = vadd.f32 0.0, %v284
  %286 = vdwg.mxu0
  %287 = vmatpush.bf16.msra.mxu0 %v221
  %288 = vmatpush.bf16.msra.mxu0 %v220
  %289 = vmatpush.bf16.msra.mxu0 %v219
  %290 = vmatpush.bf16.msra.mxu0 %v218
  %291 = vmatpush.bf16.msra.mxu0 %v217
  %292 = vmatpush.bf16.msra.mxu0 %v216
  %293 = vmatpush.bf16.msra.mxu0 %v215
  %294 = vmatpush.bf16.msra.mxu0 %v214
  %295 = vmatmul.bf16.gmra.mxu0 %v111
  %v296 = vpop.f32.mrf.mxu0
  %v297 = vadd.f32 %v248, %v296
  %v298 = vpop.f32.mrf.mxu0
  %v299 = vadd.f32 %v250, %v298
  %300 = vmatmul.bf16.gmra.mxu0 %v113
  %v301 = vpop.f32.mrf.mxu0
  %v302 = vadd.f32 %v253, %v301
  %v303 = vpop.f32.mrf.mxu0
  %v304 = vadd.f32 %v255, %v303
  %305 = vmatmul.bf16.gmra.mxu0 %v115
  %v306 = vpop.f32.mrf.mxu0
  %v307 = vadd.f32 %v258, %v306
  %v308 = vpop.f32.mrf.mxu0
  %v309 = vadd.f32 %v260, %v308
  %310 = vmatmul.bf16.gmra.mxu0 %v117
  %v311 = vpop.f32.mrf.mxu0
  %v312 = vadd.f32 %v263, %v311
  %v313 = vpop.f32.mrf.mxu0
  %v314 = vadd.f32 %v265, %v313
  %315 = vmatmul.bf16.gmra.mxu0 %v119
  %v316 = vpop.f32.mrf.mxu0
  %v317 = vadd.f32 %v268, %v316
  %v318 = vpop.f32.mrf.mxu0
  %v319 = vadd.f32 %v270, %v318
  %320 = vmatmul.bf16.gmra.mxu0 %v121
  %v321 = vpop.f32.mrf.mxu0
  %v322 = vadd.f32 %v273, %v321
  %v323 = vpop.f32.mrf.mxu0
  %v324 = vadd.f32 %v275, %v323
  %325 = vmatmul.bf16.gmra.mxu0 %v123
  %v326 = vpop.f32.mrf.mxu0
  %v327 = vadd.f32 %v278, %v326
  %v328 = vpop.f32.mrf.mxu0
  %v329 = vadd.f32 %v280, %v328
  %330 = vmatmul.bf16.gmra.mxu0 %v125
  %v331 = vpop.f32.mrf.mxu0
  %v332 = vadd.f32 %v283, %v331
  %v333 = vpop.f32.mrf.mxu0
  %v334 = vadd.f32 %v285, %v333
  %335 = vdwg.mxu0
  %v336 = vmax.f32 %v297, %v307
  %v337 = vmax.f32 %v299, %v309
  %v338 = vmax.f32 %v302, %v312
  %v339 = vmax.f32 %v304, %v314
  %v340 = vmax.f32 %v317, %v327
  %v341 = vmax.f32 %v319, %v329
  %v342 = vmax.f32 %v322, %v332
  %v343 = vmax.f32 %v324, %v334
  %v344 = vmax.f32 %v336, %v340
  %v345 = vmax.f32 %v337, %v341
  %v346 = vmax.f32 %v338, %v342
  %v347 = vmax.f32 %v339, %v343
  %v348 = vld [vmem:[%s1] sm:$0xff]
  %v349 = vld [vmem:[%s1 + $0x8] sm:$0xff]
  %v350 = vld [vmem:[%s1 + $0x10] sm:$0xff]
  %v351 = vld [vmem:[%s1 + $0x18] sm:$0xff]
  %353 = vset.pattern.permute.xlu0 0
  %354 = vperm.xlu0 %353, %v348
  %v355 = vpop.permute.xlu0 %354
  %358 = vset.pattern.permute.xlu0 0
  %359 = vperm.xlu0 %358, %v349
  %v360 = vpop.permute.xlu0 %359
  %363 = vset.pattern.permute.xlu0 0
  %364 = vperm.xlu0 %363, %v350
  %v365 = vpop.permute.xlu0 %364
  %368 = vset.pattern.permute.xlu0 0
  %369 = vperm.xlu0 %368, %v351
  %v370 = vpop.permute.xlu0 %369
  %v372 = vadd.f32 %v344, %v355
  %v373 = vadd.f32 %v345, %v360
  %v374 = vadd.f32 %v346, %v365
  %v375 = vadd.f32 %v347, %v370
  %v376 = vmax.f32 %v372, 0.0
  %v377 = vmax.f32 %v373, 0.0
  %v378 = vmax.f32 %v374, 0.0
  %v379 = vmax.f32 %v375, 0.0
  %v380 = vpack.c.bf16 %v376, %v376
  %v381 = vpack.c.bf16 %v377, %v377
  %v382 = vpack.c.bf16 %v378, %v378
  %v383 = vpack.c.bf16 %v379, %v379
  %384 = vst [vmem:[%s3] sm:$0xf] %v380
  %385 = vst [vmem:[%s3 + $0x4] sm:$0xf] %v381
  %386 = vst [vmem:[%s3 + $0x8] sm:$0xf] %v382
  %387 = vst [vmem:[%s3 + $0xc] sm:$0xf] %v383
  // Predicated region
  $region14: #{simple_cnn_forward.4} parent=0 // pred_check
    _
  $region15: #{simple_cnn_forward.4} parent=0 // pred_check_branch
    %389 = sbr.rel (0) target = $region17
  $region16: #{simple_cnn_forward.4} parent=0 // pred_region
    _
  $region17: #{simple_cnn_forward.4} parent=0 // pred_fallthru
    _
  // Predicated region
  $region18: #{simple_cnn_forward.4} parent=0 // pred_check
    _
  $region19: #{simple_cnn_forward.4} parent=0 // pred_check_branch
    %391 = sbr.rel (0) target = $region21
  $region20: #{simple_cnn_forward.4} parent=0 // pred_region
    _
  $region21: #{simple_cnn_forward.4} parent=0 // pred_fallthru
    _

// kernel: simple_cnn_forward.5
$region0: #{simple_cnn_forward.5}
  #allocation0 [shape = 'u32[]', space=smem, size = 0x4, offset = 0x4, fixed_abs, tag = 'smem constant byte address 0x4 - core index']
  #allocation1 [shape = 'u32[72,128]{1,0:T(1,128)}', space=vmem, size = 0x9000, scoped, tag = 'internal scratch']
  %s0 = inlined_call_operand.vmem [shape: bf16[2,2048], index: 0, kind: input, shape index: {}]
  %s1 = inlined_call_operand.vmem [shape: bf16[2048,128], index: 1, kind: input, shape index: {}]
  %s2 = inlined_call_operand.vmem [shape: f32[1,128], index: 2, kind: input, shape index: {}]
  %s3 = inlined_call_operand.vmem [shape: bf16[128,128], index: 3, kind: input, shape index: {}]
  %s4 = inlined_call_operand.vmem [shape: f32[1,128], index: 4, kind: input, shape index: {}]
  %s5 = inlined_call_operand.hbm [shape: f32[2,128], index: 5, kind: output, shape index: {}]
  %s6 = sld [smem:[#allocation0]]
  $region30: #{simple_cnn_forward.5} parent=0
    _
  %s8 = ssub.s32 1, %s6
  %s9 = scalar_select 0, %s8, %s6
  $region1: #{simple_cnn_forward.5} parent=0
    #allocation2 [shape = 'u8[1024]{0}', space=vmem, size = 0x400, scoped, tag = 'output window, operand 0, single buffered']
    #allocation3 [shape = 's32[1]{0}', space=sflag, size = 0x4, scoped, tag = 'scoped memory for simple_cnn_forward.5']
    %10 = vsyncpa [#allocation3], 0
    // Predicated region
    $region2: #{simple_cnn_forward.5} parent=1 // pred_check
      _
    $region3: #{simple_cnn_forward.5} parent=1 // pred_check_branch
      %12 = sbr.rel (0) target = $region5
    $region4: #{simple_cnn_forward.5} parent=1 // pred_region
      _
    $region5: #{simple_cnn_forward.5} parent=1 // pred_fallthru
      _
    // Predicated region
    $region6: #{simple_cnn_forward.5} parent=1 // pred_check
      _
    $region7: #{simple_cnn_forward.5} parent=1 // pred_check_branch
      %14 = sbr.rel (0) target = $region9
    $region8: #{simple_cnn_forward.5} parent=1 // pred_region
      _
    $region9: #{simple_cnn_forward.5} parent=1 // pred_fallthru
      _
    // Predicated region
    $region10: #{simple_cnn_forward.5} parent=1 // pred_check
      _
    $region11: #{simple_cnn_forward.5} parent=1 // pred_check_branch
      %16 = sbr.rel (0) target = $region13
    $region12: #{simple_cnn_forward.5} parent=1 // pred_region
      _
    $region13: #{simple_cnn_forward.5} parent=1 // pred_fallthru
      _
    // Predicated region
    $region14: #{simple_cnn_forward.5} parent=1 // pred_check
      _
    $region15: #{simple_cnn_forward.5} parent=1 // pred_check_branch
      %18 = sbr.rel (0) target = $region17
    $region16: #{simple_cnn_forward.5} parent=1 // pred_region
      _
    $region17: #{simple_cnn_forward.5} parent=1 // pred_fallthru
      _
    // Predicated region
    $region18: #{simple_cnn_forward.5} parent=1 // pred_check
      _
    $region19: #{simple_cnn_forward.5} parent=1 // pred_check_branch
      %20 = sbr.rel (0) target = $region21
    $region20: #{simple_cnn_forward.5} parent=1 // pred_region
      _
    $region21: #{simple_cnn_forward.5} parent=1 // pred_fallthru
      _
    %v21 = vld [vmem:[%s0] sm:$0xff]
    %v22 = vld [vmem:[%s0 + $0x8] sm:$0xff]
    %v23 = vld [vmem:[%s1] sm:$0xf]
    %v24 = vld [vmem:[%s1 + $0x4] sm:$0xf]
    %v25 = vld [vmem:[%s1 + $0x8] sm:$0xf]
    %v26 = vld [vmem:[%s1 + $0xc] sm:$0xf]
    %v27 = vld [vmem:[%s1 + $0x10] sm:$0xf]
    %v28 = vld [vmem:[%s1 + $0x14] sm:$0xf]
    %v29 = vld [vmem:[%s1 + $0x18] sm:$0xf]
    %v30 = vld [vmem:[%s1 + $0x1c] sm:$0xf]
    %v31 = vld [vmem:[%s1 + $0x20] sm:$0xf]
    %v32 = vld [vmem:[%s1 + $0x24] sm:$0xf]
    %v33 = vld [vmem:[%s1 + $0x28] sm:$0xf]
    %v34 = vld [vmem:[%s1 + $0x2c] sm:$0xf]
    %v35 = vld [vmem:[%s1 + $0x30] sm:$0xf]
    %v36 = vld [vmem:[%s1 + $0x34] sm:$0xf]
    %v37 = vld [vmem:[%s1 + $0x38] sm:$0xf]
    %v38 = vld [vmem:[%s1 + $0x3c] sm:$0xf]
    %v39 = vld [vmem:[%s1 + $0x40] sm:$0xf]
    %v40 = vld [vmem:[%s1 + $0x44] sm:$0xf]
    %v41 = vld [vmem:[%s1 + $0x48] sm:$0xf]
    %v42 = vld [vmem:[%s1 + $0x4c] sm:$0xf]
    %v43 = vld [vmem:[%s1 + $0x50] sm:$0xf]
    %v44 = vld [vmem:[%s1 + $0x54] sm:$0xf]
    %v45 = vld [vmem:[%s1 + $0x58] sm:$0xf]
    %v46 = vld [vmem:[%s1 + $0x5c] sm:$0xf]
    %v47 = vld [vmem:[%s1 + $0x60] sm:$0xf]
    %v48 = vld [vmem:[%s1 + $0x64] sm:$0xf]
    %v49 = vld [vmem:[%s1 + $0x68] sm:$0xf]
    %v50 = vld [vmem:[%s1 + $0x6c] sm:$0xf]
    %v51 = vld [vmem:[%s1 + $0x70] sm:$0xf]
    %v52 = vld [vmem:[%s1 + $0x74] sm:$0xf]
    %v53 = vld [vmem:[%s1 + $0x78] sm:$0xf]
    %v54 = vld [vmem:[%s1 + $0x7c] sm:$0xf]
    %v55 = vld [vmem:[%s1 + $0x80] sm:$0xf]
    %v56 = vld [vmem:[%s1 + $0x84] sm:$0xf]
    %v57 = vld [vmem:[%s1 + $0x88] sm:$0xf]
    %v58 = vld [vmem:[%s1 + $0x8c] sm:$0xf]
    %v59 = vld [vmem:[%s1 + $0x90] sm:$0xf]
    %v60 = vld [vmem:[%s1 + $0x94] sm:$0xf]
    %v61 = vld [vmem:[%s1 + $0x98] sm:$0xf]
    %v62 = vld [vmem:[%s1 + $0x9c] sm:$0xf]
    %v63 = vld [vmem:[%s1 + $0xa0] sm:$0xf]
    %v64 = vld [vmem:[%s1 + $0xa4] sm:$0xf]
    %v65 = vld [vmem:[%s1 + $0xa8] sm:$0xf]
    %v66 = vld [vmem:[%s1 + $0xac] sm:$0xf]
    %v67 = vld [vmem:[%s1 + $0xb0] sm:$0xf]
    %v68 = vld [vmem:[%s1 + $0xb4] sm:$0xf]
    %v69 = vld [vmem:[%s1 + $0xb8] sm:$0xf]
    %v70 = vld [vmem:[%s1 + $0xbc] sm:$0xf]
    %v71 = vld [vmem:[%s1 + $0xc0] sm:$0xf]
    %v72 = vld [vmem:[%s1 + $0xc4] sm:$0xf]
    %v73 = vld [vmem:[%s1 + $0xc8] sm:$0xf]
    %v74 = vld [vmem:[%s1 + $0xcc] sm:$0xf]
    %v75 = vld [vmem:[%s1 + $0xd0] sm:$0xf]
    %v76 = vld [vmem:[%s1 + $0xd4] sm:$0xf]
    %v77 = vld [vmem:[%s1 + $0xd8] sm:$0xf]
    %v78 = vld [vmem:[%s1 + $0xdc] sm:$0xf]
    %v79 = vld [vmem:[%s1 + $0xe0] sm:$0xf]
    %v80 = vld [vmem:[%s1 + $0xe4] sm:$0xf]
    %v81 = vld [vmem:[%s1 + $0xe8] sm:$0xf]
    %v82 = vld [vmem:[%s1 + $0xec] sm:$0xf]
    %v83 = vld [vmem:[%s1 + $0xf0] sm:$0xf]
    %v84 = vld [vmem:[%s1 + $0xf4] sm:$0xf]
    %v85 = vld [vmem:[%s1 + $0xf8] sm:$0xf]
    %v86 = vld [vmem:[%s1 + $0xfc] sm:$0xf]
    %v87 = vld [vmem:[%s1 + $0x100] sm:$0xf]
    %v88 = vld [vmem:[%s1 + $0x104] sm:$0xf]
    %v89 = vld [vmem:[%s1 + $0x108] sm:$0xf]
    %v90 = vld [vmem:[%s1 + $0x10c] sm:$0xf]
    %v91 = vld [vmem:[%s1 + $0x110] sm:$0xf]
    %v92 = vld [vmem:[%s1 + $0x114] sm:$0xf]
    %v93 = vld [vmem:[%s1 + $0x118] sm:$0xf]
    %v94 = vld [vmem:[%s1 + $0x11c] sm:$0xf]
    %v95 = vld [vmem:[%s1 + $0x120] sm:$0xf]
    %v96 = vld [vmem:[%s1 + $0x124] sm:$0xf]
    %v97 = vld [vmem:[%s1 + $0x128] sm:$0xf]
    %v98 = vld [vmem:[%s1 + $0x12c] sm:$0xf]
    %v99 = vld [vmem:[%s1 + $0x130] sm:$0xf]
    %v100 = vld [vmem:[%s1 + $0x134] sm:$0xf]
    %v101 = vld [vmem:[%s1 + $0x138] sm:$0xf]
    %v102 = vld [vmem:[%s1 + $0x13c] sm:$0xf]
    %v103 = vld [vmem:[%s1 + $0x140] sm:$0xf]
    %v104 = vld [vmem:[%s1 + $0x144] sm:$0xf]
    %v105 = vld [vmem:[%s1 + $0x148] sm:$0xf]
    %v106 = vld [vmem:[%s1 + $0x14c] sm:$0xf]
    %v107 = vld [vmem:[%s1 + $0x150] sm:$0xf]
    %v108 = vld [vmem:[%s1 + $0x154] sm:$0xf]
    %v109 = vld [vmem:[%s1 + $0x158] sm:$0xf]
    %v110 = vld [vmem:[%s1 + $0x15c] sm:$0xf]
    %v111 = vld [vmem:[%s1 + $0x160] sm:$0xf]
    %v112 = vld [vmem:[%s1 + $0x164] sm:$0xf]
    %v113 = vld [vmem:[%s1 + $0x168] sm:$0xf]
    %v114 = vld [vmem:[%s1 + $0x16c] sm:$0xf]
    %v115 = vld [vmem:[%s1 + $0x170] sm:$0xf]
    %v116 = vld [vmem:[%s1 + $0x174] sm:$0xf]
    %v117 = vld [vmem:[%s1 + $0x178] sm:$0xf]
    %v118 = vld [vmem:[%s1 + $0x17c] sm:$0xf]
    %v119 = vld [vmem:[%s1 + $0x180] sm:$0xf]
    %v120 = vld [vmem:[%s1 + $0x184] sm:$0xf]
    %v121 = vld [vmem:[%s1 + $0x188] sm:$0xf]
    %v122 = vld [vmem:[%s1 + $0x18c] sm:$0xf]
    %v123 = vld [vmem:[%s1 + $0x190] sm:$0xf]
    %v124 = vld [vmem:[%s1 + $0x194] sm:$0xf]
    %v125 = vld [vmem:[%s1 + $0x198] sm:$0xf]
    %v126 = vld [vmem:[%s1 + $0x19c] sm:$0xf]
    %v127 = vld [vmem:[%s1 + $0x1a0] sm:$0xf]
    %v128 = vld [vmem:[%s1 + $0x1a4] sm:$0xf]
    %v129 = vld [vmem:[%s1 + $0x1a8] sm:$0xf]
    %v130 = vld [vmem:[%s1 + $0x1ac] sm:$0xf]
    %v131 = vld [vmem:[%s1 + $0x1b0] sm:$0xf]
    %v132 = vld [vmem:[%s1 + $0x1b4] sm:$0xf]
    %v133 = vld [vmem:[%s1 + $0x1b8] sm:$0xf]
    %v134 = vld [vmem:[%s1 + $0x1bc] sm:$0xf]
    %v135 = vld [vmem:[%s1 + $0x1c0] sm:$0xf]
    %v136 = vld [vmem:[%s1 + $0x1c4] sm:$0xf]
    %v137 = vld [vmem:[%s1 + $0x1c8] sm:$0xf]
    %v138 = vld [vmem:[%s1 + $0x1cc] sm:$0xf]
    %v139 = vld [vmem:[%s1 + $0x1d0] sm:$0xf]
    %v140 = vld [vmem:[%s1 + $0x1d4] sm:$0xf]
    %v141 = vld [vmem:[%s1 + $0x1d8] sm:$0xf]
    %v142 = vld [vmem:[%s1 + $0x1dc] sm:$0xf]
    %v143 = vld [vmem:[%s1 + $0x1e0] sm:$0xf]
    %v144 = vld [vmem:[%s1 + $0x1e4] sm:$0xf]
    %v145 = vld [vmem:[%s1 + $0x1e8] sm:$0xf]
    %v146 = vld [vmem:[%s1 + $0x1ec] sm:$0xf]
    %v147 = vld [vmem:[%s1 + $0x1f0] sm:$0xf]
    %v148 = vld [vmem:[%s1 + $0x1f4] sm:$0xf]
    %v149 = vld [vmem:[%s1 + $0x1f8] sm:$0xf]
    %v150 = vld [vmem:[%s1 + $0x1fc] sm:$0xf]
    %v151 = vld [vmem:[%s1 + $0x200] sm:$0xf]
    %v152 = vld [vmem:[%s1 + $0x204] sm:$0xf]
    %v153 = vld [vmem:[%s1 + $0x208] sm:$0xf]
    %v154 = vld [vmem:[%s1 + $0x20c] sm:$0xf]
    %v155 = vld [vmem:[%s1 + $0x210] sm:$0xf]
    %v156 = vld [vmem:[%s1 + $0x214] sm:$0xf]
    %v157 = vld [vmem:[%s1 + $0x218] sm:$0xf]
    %v158 = vld [vmem:[%s1 + $0x21c] sm:$0xf]
    %v159 = vld [vmem:[%s1 + $0x220] sm:$0xf]
    %v160 = vld [vmem:[%s1 + $0x224] sm:$0xf]
    %v161 = vld [vmem:[%s1 + $0x228] sm:$0xf]
    %v162 = vld [vmem:[%s1 + $0x22c] sm:$0xf]
    %v163 = vld [vmem:[%s1 + $0x230] sm:$0xf]
    %v164 = vld [vmem:[%s1 + $0x234] sm:$0xf]
    %v165 = vld [vmem:[%s1 + $0x238] sm:$0xf]
    %v166 = vld [vmem:[%s1 + $0x23c] sm:$0xf]
    %v167 = vld [vmem:[%s1 + $0x240] sm:$0xf]
    %v168 = vld [vmem:[%s1 + $0x244] sm:$0xf]
    %v169 = vld [vmem:[%s1 + $0x248] sm:$0xf]
    %v170 = vld [vmem:[%s1 + $0x24c] sm:$0xf]
    %v171 = vld [vmem:[%s1 + $0x250] sm:$0xf]
    %v172 = vld [vmem:[%s1 + $0x254] sm:$0xf]
    %v173 = vld [vmem:[%s1 + $0x258] sm:$0xf]
    %v174 = vld [vmem:[%s1 + $0x25c] sm:$0xf]
    %v175 = vld [vmem:[%s1 + $0x260] sm:$0xf]
    %v176 = vld [vmem:[%s1 + $0x264] sm:$0xf]
    %v177 = vld [vmem:[%s1 + $0x268] sm:$0xf]
    %v178 = vld [vmem:[%s1 + $0x26c] sm:$0xf]
    %v179 = vld [vmem:[%s1 + $0x270] sm:$0xf]
    %v180 = vld [vmem:[%s1 + $0x274] sm:$0xf]
    %v181 = vld [vmem:[%s1 + $0x278] sm:$0xf]
    %v182 = vld [vmem:[%s1 + $0x27c] sm:$0xf]
    %v183 = vld [vmem:[%s1 + $0x280] sm:$0xf]
    %v184 = vld [vmem:[%s1 + $0x284] sm:$0xf]
    %v185 = vld [vmem:[%s1 + $0x288] sm:$0xf]
    %v186 = vld [vmem:[%s1 + $0x28c] sm:$0xf]
    %v187 = vld [vmem:[%s1 + $0x290] sm:$0xf]
    %v188 = vld [vmem:[%s1 + $0x294] sm:$0xf]
    %v189 = vld [vmem:[%s1 + $0x298] sm:$0xf]
    %v190 = vld [vmem:[%s1 + $0x29c] sm:$0xf]
    %v191 = vld [vmem:[%s1 + $0x2a0] sm:$0xf]
    %v192 = vld [vmem:[%s1 + $0x2a4] sm:$0xf]
    %v193 = vld [vmem:[%s1 + $0x2a8] sm:$0xf]
    %v194 = vld [vmem:[%s1 + $0x2ac] sm:$0xf]
    %v195 = vld [vmem:[%s1 + $0x2b0] sm:$0xf]
    %v196 = vld [vmem:[%s1 + $0x2b4] sm:$0xf]
    %v197 = vld [vmem:[%s1 + $0x2b8] sm:$0xf]
    %v198 = vld [vmem:[%s1 + $0x2bc] sm:$0xf]
    %v199 = vld [vmem:[%s1 + $0x2c0] sm:$0xf]
    %v200 = vld [vmem:[%s1 + $0x2c4] sm:$0xf]
    %v201 = vld [vmem:[%s1 + $0x2c8] sm:$0xf]
    %v202 = vld [vmem:[%s1 + $0x2cc] sm:$0xf]
    %v203 = vld [vmem:[%s1 + $0x2d0] sm:$0xf]
    %v204 = vld [vmem:[%s1 + $0x2d4] sm:$0xf]
    %v205 = vld [vmem:[%s1 + $0x2d8] sm:$0xf]
    %v206 = vld [vmem:[%s1 + $0x2dc] sm:$0xf]
    %v207 = vld [vmem:[%s1 + $0x2e0] sm:$0xf]
    %v208 = vld [vmem:[%s1 + $0x2e4] sm:$0xf]
    %v209 = vld [vmem:[%s1 + $0x2e8] sm:$0xf]
    %v210 = vld [vmem:[%s1 + $0x2ec] sm:$0xf]
    %v211 = vld [vmem:[%s1 + $0x2f0] sm:$0xf]
    %v212 = vld [vmem:[%s1 + $0x2f4] sm:$0xf]
    %v213 = vld [vmem:[%s1 + $0x2f8] sm:$0xf]
    %v214 = vld [vmem:[%s1 + $0x2fc] sm:$0xf]
    %v215 = vld [vmem:[%s1 + $0x300] sm:$0xf]
    %v216 = vld [vmem:[%s1 + $0x304] sm:$0xf]
    %v217 = vld [vmem:[%s1 + $0x308] sm:$0xf]
    %v218 = vld [vmem:[%s1 + $0x30c] sm:$0xf]
    %v219 = vld [vmem:[%s1 + $0x310] sm:$0xf]
    %v220 = vld [vmem:[%s1 + $0x314] sm:$0xf]
    %v221 = vld [vmem:[%s1 + $0x318] sm:$0xf]
    %v222 = vld [vmem:[%s1 + $0x31c] sm:$0xf]
    %v223 = vld [vmem:[%s1 + $0x320] sm:$0xf]
    %v224 = vld [vmem:[%s1 + $0x324] sm:$0xf]
    %v225 = vld [vmem:[%s1 + $0x328] sm:$0xf]
    %v226 = vld [vmem:[%s1 + $0x32c] sm:$0xf]
    %v227 = vld [vmem:[%s1 + $0x330] sm:$0xf]
    %v228 = vld [vmem:[%s1 + $0x334] sm:$0xf]
    %v229 = vld [vmem:[%s1 + $0x338] sm:$0xf]
    %v230 = vld [vmem:[%s1 + $0x33c] sm:$0xf]
    %v231 = vld [vmem:[%s1 + $0x340] sm:$0xf]
    %v232 = vld [vmem:[%s1 + $0x344] sm:$0xf]
    %v233 = vld [vmem:[%s1 + $0x348] sm:$0xf]
    %v234 = vld [vmem:[%s1 + $0x34c] sm:$0xf]
    %v235 = vld [vmem:[%s1 + $0x350] sm:$0xf]
    %v236 = vld [vmem:[%s1 + $0x354] sm:$0xf]
    %v237 = vld [vmem:[%s1 + $0x358] sm:$0xf]
    %v238 = vld [vmem:[%s1 + $0x35c] sm:$0xf]
    %v239 = vld [vmem:[%s1 + $0x360] sm:$0xf]
    %v240 = vld [vmem:[%s1 + $0x364] sm:$0xf]
    %v241 = vld [vmem:[%s1 + $0x368] sm:$0xf]
    %v242 = vld [vmem:[%s1 + $0x36c] sm:$0xf]
    %v243 = vld [vmem:[%s1 + $0x370] sm:$0xf]
    %v244 = vld [vmem:[%s1 + $0x374] sm:$0xf]
    %v245 = vld [vmem:[%s1 + $0x378] sm:$0xf]
    %v246 = vld [vmem:[%s1 + $0x37c] sm:$0xf]
    %v247 = vld [vmem:[%s1 + $0x380] sm:$0xf]
    %v248 = vld [vmem:[%s1 + $0x384] sm:$0xf]
    %v249 = vld [vmem:[%s1 + $0x388] sm:$0xf]
    %v250 = vld [vmem:[%s1 + $0x38c] sm:$0xf]
    %v251 = vld [vmem:[%s1 + $0x390] sm:$0xf]
    %v252 = vld [vmem:[%s1 + $0x394] sm:$0xf]
    %v253 = vld [vmem:[%s1 + $0x398] sm:$0xf]
    %v254 = vld [vmem:[%s1 + $0x39c] sm:$0xf]
    %v255 = vld [vmem:[%s1 + $0x3a0] sm:$0xf]
    %v256 = vld [vmem:[%s1 + $0x3a4] sm:$0xf]
    %v257 = vld [vmem:[%s1 + $0x3a8] sm:$0xf]
    %v258 = vld [vmem:[%s1 + $0x3ac] sm:$0xf]
    %v259 = vld [vmem:[%s1 + $0x3b0] sm:$0xf]
    %v260 = vld [vmem:[%s1 + $0x3b4] sm:$0xf]
    %v261 = vld [vmem:[%s1 + $0x3b8] sm:$0xf]
    %v262 = vld [vmem:[%s1 + $0x3bc] sm:$0xf]
    %v263 = vld [vmem:[%s1 + $0x3c0] sm:$0xf]
    %v264 = vld [vmem:[%s1 + $0x3c4] sm:$0xf]
    %v265 = vld [vmem:[%s1 + $0x3c8] sm:$0xf]
    %v266 = vld [vmem:[%s1 + $0x3cc] sm:$0xf]
    %v267 = vld [vmem:[%s1 + $0x3d0] sm:$0xf]
    %v268 = vld [vmem:[%s1 + $0x3d4] sm:$0xf]
    %v269 = vld [vmem:[%s1 + $0x3d8] sm:$0xf]
    %v270 = vld [vmem:[%s1 + $0x3dc] sm:$0xf]
    %v271 = vld [vmem:[%s1 + $0x3e0] sm:$0xf]
    %v272 = vld [vmem:[%s1 + $0x3e4] sm:$0xf]
    %v273 = vld [vmem:[%s1 + $0x3e8] sm:$0xf]
    %v274 = vld [vmem:[%s1 + $0x3ec] sm:$0xf]
    %v275 = vld [vmem:[%s1 + $0x3f0] sm:$0xf]
    %v276 = vld [vmem:[%s1 + $0x3f4] sm:$0xf]
    %v277 = vld [vmem:[%s1 + $0x3f8] sm:$0xf]
    %v278 = vld [vmem:[%s1 + $0x3fc] sm:$0xf]
    %v279 = vld [vmem:[%s2] sm:$0x1]
    %v281 = vperm.slane %v279, 0
    %284 = vst [vmem:[#allocation1] ss:$9 sm:$0xff] %v21
    %v285 = vld [vmem:[#allocation1] sm:$0xff]
    %v286 = vld [vmem:[#allocation1 + $0x9] sm:$0xff]
    %v287 = vld [vmem:[#allocation1 + $0x12] sm:$0xff]
    %v288 = vld [vmem:[#allocation1 + $0x1b] sm:$0xff]
    %v289 = vld [vmem:[#allocation1 + $0x24] sm:$0xff]
    %v290 = vld [vmem:[#allocation1 + $0x2d] sm:$0xff]
    %v291 = vld [vmem:[#allocation1 + $0x36] sm:$0xff]
    %v292 = vld [vmem:[#allocation1 + $0x3f] sm:$0xff]
    %294 = vst [vmem:[#allocation1] ss:$9 sm:$0xff] %v22
    %v295 = vld [vmem:[#allocation1] sm:$0xff]
    %v296 = vld [vmem:[#allocation1 + $0x9] sm:$0xff]
    %v297 = vld [vmem:[#allocation1 + $0x12] sm:$0xff]
    %v298 = vld [vmem:[#allocation1 + $0x1b] sm:$0xff]
    %v299 = vld [vmem:[#allocation1 + $0x24] sm:$0xff]
    %v300 = vld [vmem:[#allocation1 + $0x2d] sm:$0xff]
    %v301 = vld [vmem:[#allocation1 + $0x36] sm:$0xff]
    %v302 = vld [vmem:[#allocation1 + $0x3f] sm:$0xff]
    %v575 = vunpack.c.l.b16 %v23
    %v576 = vunpack.c.l.b16 %v24
    %v577 = vunpack.c.l.b16 %v25
    %v578 = vunpack.c.l.b16 %v26
    %v579 = vunpack.c.l.b16 %v27
    %v580 = vunpack.c.l.b16 %v28
    %v581 = vunpack.c.l.b16 %v29
    %v582 = vunpack.c.l.b16 %v30
    %v583 = vunpack.c.l.b16 %v31
    %v584 = vunpack.c.l.b16 %v32
    %v585 = vunpack.c.l.b16 %v33
    %v586 = vunpack.c.l.b16 %v34
    %v587 = vunpack.c.l.b16 %v35
    %v588 = vunpack.c.l.b16 %v36
    %v589 = vunpack.c.l.b16 %v37
    %v590 = vunpack.c.l.b16 %v38
    %v591 = vunpack.c.l.b16 %v39
    %v592 = vunpack.c.l.b16 %v40
    %v593 = vunpack.c.l.b16 %v41
    %v594 = vunpack.c.l.b16 %v42
    %v595 = vunpack.c.l.b16 %v43
    %v596 = vunpack.c.l.b16 %v44
    %v597 = vunpack.c.l.b16 %v45
    %v598 = vunpack.c.l.b16 %v46
    %v599 = vunpack.c.l.b16 %v47
    %v600 = vunpack.c.l.b16 %v48
    %v601 = vunpack.c.l.b16 %v49
    %v602 = vunpack.c.l.b16 %v50
    %v603 = vunpack.c.l.b16 %v51
    %v604 = vunpack.c.l.b16 %v52
    %v605 = vunpack.c.l.b16 %v53
    %v606 = vunpack.c.l.b16 %v54
    %v607 = vunpack.c.l.b16 %v55
    %v608 = vunpack.c.l.b16 %v56
    %v609 = vunpack.c.l.b16 %v57
    %v610 = vunpack.c.l.b16 %v58
    %v611 = vunpack.c.l.b16 %v59
    %v612 = vunpack.c.l.b16 %v60
    %v613 = vunpack.c.l.b16 %v61
    %v614 = vunpack.c.l.b16 %v62
    %v615 = vunpack.c.l.b16 %v63
    %v616 = vunpack.c.l.b16 %v64
    %v617 = vunpack.c.l.b16 %v65
    %v618 = vunpack.c.l.b16 %v66
    %v619 = vunpack.c.l.b16 %v67
    %v620 = vunpack.c.l.b16 %v68
    %v621 = vunpack.c.l.b16 %v69
    %v622 = vunpack.c.l.b16 %v70
    %v623 = vunpack.c.l.b16 %v71
    %v624 = vunpack.c.l.b16 %v72
    %v625 = vunpack.c.l.b16 %v73
    %v626 = vunpack.c.l.b16 %v74
    %v627 = vunpack.c.l.b16 %v75
    %v628 = vunpack.c.l.b16 %v76
    %v629 = vunpack.c.l.b16 %v77
    %v630 = vunpack.c.l.b16 %v78
    %v631 = vunpack.c.l.b16 %v79
    %v632 = vunpack.c.l.b16 %v80
    %v633 = vunpack.c.l.b16 %v81
    %v634 = vunpack.c.l.b16 %v82
    %v635 = vunpack.c.l.b16 %v83
    %v636 = vunpack.c.l.b16 %v84
    %v637 = vunpack.c.l.b16 %v85
    %v638 = vunpack.c.l.b16 %v86
    %v639 = vunpack.c.l.b16 %v87
    %v640 = vunpack.c.l.b16 %v88
    %v641 = vunpack.c.l.b16 %v89
    %v642 = vunpack.c.l.b16 %v90
    %v643 = vunpack.c.l.b16 %v91
    %v644 = vunpack.c.l.b16 %v92
    %v645 = vunpack.c.l.b16 %v93
    %v646 = vunpack.c.l.b16 %v94
    %v647 = vunpack.c.l.b16 %v95
    %v648 = vunpack.c.l.b16 %v96
    %v649 = vunpack.c.l.b16 %v97
    %v650 = vunpack.c.l.b16 %v98
    %v651 = vunpack.c.l.b16 %v99
    %v652 = vunpack.c.l.b16 %v100
    %v653 = vunpack.c.l.b16 %v101
    %v654 = vunpack.c.l.b16 %v102
    %v655 = vunpack.c.l.b16 %v103
    %v656 = vunpack.c.l.b16 %v104
    %v657 = vunpack.c.l.b16 %v105
    %v658 = vunpack.c.l.b16 %v106
    %v659 = vunpack.c.l.b16 %v107
    %v660 = vunpack.c.l.b16 %v108
    %v661 = vunpack.c.l.b16 %v109
    %v662 = vunpack.c.l.b16 %v110
    %v663 = vunpack.c.l.b16 %v111
    %v664 = vunpack.c.l.b16 %v112
    %v665 = vunpack.c.l.b16 %v113
    %v666 = vunpack.c.l.b16 %v114
    %v667 = vunpack.c.l.b16 %v115
    %v668 = vunpack.c.l.b16 %v116
    %v669 = vunpack.c.l.b16 %v117
    %v670 = vunpack.c.l.b16 %v118
    %v671 = vunpack.c.l.b16 %v119
    %v672 = vunpack.c.l.b16 %v120
    %v673 = vunpack.c.l.b16 %v121
    %v674 = vunpack.c.l.b16 %v122
    %v675 = vunpack.c.l.b16 %v123
    %v676 = vunpack.c.l.b16 %v124
    %v677 = vunpack.c.l.b16 %v125
    %v678 = vunpack.c.l.b16 %v126
    %v679 = vunpack.c.l.b16 %v127
    %v680 = vunpack.c.l.b16 %v128
    %v681 = vunpack.c.l.b16 %v129
    %v682 = vunpack.c.l.b16 %v130
    %v683 = vunpack.c.l.b16 %v131
    %v684 = vunpack.c.l.b16 %v132
    %v685 = vunpack.c.l.b16 %v133
    %v686 = vunpack.c.l.b16 %v134
    %v687 = vunpack.c.l.b16 %v135
    %v688 = vunpack.c.l.b16 %v136
    %v689 = vunpack.c.l.b16 %v137
    %v690 = vunpack.c.l.b16 %v138
    %v691 = vunpack.c.l.b16 %v139
    %v692 = vunpack.c.l.b16 %v140
    %v693 = vunpack.c.l.b16 %v141
    %v694 = vunpack.c.l.b16 %v142
    %v695 = vunpack.c.l.b16 %v143
    %v696 = vunpack.c.l.b16 %v144
    %v697 = vunpack.c.l.b16 %v145
    %v698 = vunpack.c.l.b16 %v146
    %v699 = vunpack.c.l.b16 %v147
    %v700 = vunpack.c.l.b16 %v148
    %v701 = vunpack.c.l.b16 %v149
    %v702 = vunpack.c.l.b16 %v150
    %v703 = vunpack.c.l.b16 %v151
    %v704 = vunpack.c.l.b16 %v152
    %v705 = vunpack.c.l.b16 %v153
    %v706 = vunpack.c.l.b16 %v154
    %v707 = vunpack.c.l.b16 %v155
    %v708 = vunpack.c.l.b16 %v156
    %v709 = vunpack.c.l.b16 %v157
    %v710 = vunpack.c.l.b16 %v158
    %v711 = vunpack.c.l.b16 %v159
    %v712 = vunpack.c.l.b16 %v160
    %v713 = vunpack.c.l.b16 %v161
    %v714 = vunpack.c.l.b16 %v162
    %v715 = vunpack.c.l.b16 %v163
    %v716 = vunpack.c.l.b16 %v164
    %v717 = vunpack.c.l.b16 %v165
    %v718 = vunpack.c.l.b16 %v166
    %v719 = vunpack.c.l.b16 %v167
    %v720 = vunpack.c.l.b16 %v168
    %v721 = vunpack.c.l.b16 %v169
    %v722 = vunpack.c.l.b16 %v170
    %v723 = vunpack.c.l.b16 %v171
    %v724 = vunpack.c.l.b16 %v172
    %v725 = vunpack.c.l.b16 %v173
    %v726 = vunpack.c.l.b16 %v174
    %v727 = vunpack.c.l.b16 %v175
    %v728 = vunpack.c.l.b16 %v176
    %v729 = vunpack.c.l.b16 %v177
    %v730 = vunpack.c.l.b16 %v178
    %v731 = vunpack.c.l.b16 %v179
    %v732 = vunpack.c.l.b16 %v180
    %v733 = vunpack.c.l.b16 %v181
    %v734 = vunpack.c.l.b16 %v182
    %v735 = vunpack.c.l.b16 %v183
    %v736 = vunpack.c.l.b16 %v184
    %v737 = vunpack.c.l.b16 %v185
    %v738 = vunpack.c.l.b16 %v186
    %v739 = vunpack.c.l.b16 %v187
    %v740 = vunpack.c.l.b16 %v188
    %v741 = vunpack.c.l.b16 %v189
    %v742 = vunpack.c.l.b16 %v190
    %v743 = vunpack.c.l.b16 %v191
    %v744 = vunpack.c.l.b16 %v192
    %v745 = vunpack.c.l.b16 %v193
    %v746 = vunpack.c.l.b16 %v194
    %v747 = vunpack.c.l.b16 %v195
    %v748 = vunpack.c.l.b16 %v196
    %v749 = vunpack.c.l.b16 %v197
    %v750 = vunpack.c.l.b16 %v198
    %v751 = vunpack.c.l.b16 %v199
    %v752 = vunpack.c.l.b16 %v200
    %v753 = vunpack.c.l.b16 %v201
    %v754 = vunpack.c.l.b16 %v202
    %v755 = vunpack.c.l.b16 %v203
    %v756 = vunpack.c.l.b16 %v204
    %v757 = vunpack.c.l.b16 %v205
    %v758 = vunpack.c.l.b16 %v206
    %v759 = vunpack.c.l.b16 %v207
    %v760 = vunpack.c.l.b16 %v208
    %v761 = vunpack.c.l.b16 %v209
    %v762 = vunpack.c.l.b16 %v210
    %v763 = vunpack.c.l.b16 %v211
    %v764 = vunpack.c.l.b16 %v212
    %v765 = vunpack.c.l.b16 %v213
    %v766 = vunpack.c.l.b16 %v214
    %v767 = vunpack.c.l.b16 %v215
    %v768 = vunpack.c.l.b16 %v216
    %v769 = vunpack.c.l.b16 %v217
    %v770 = vunpack.c.l.b16 %v218
    %v771 = vunpack.c.l.b16 %v219
    %v772 = vunpack.c.l.b16 %v220
    %v773 = vunpack.c.l.b16 %v221
    %v774 = vunpack.c.l.b16 %v222
    %v775 = vunpack.c.l.b16 %v223
    %v776 = vunpack.c.l.b16 %v224
    %v777 = vunpack.c.l.b16 %v225
    %v778 = vunpack.c.l.b16 %v226
    %v779 = vunpack.c.l.b16 %v227
    %v780 = vunpack.c.l.b16 %v228
    %v781 = vunpack.c.l.b16 %v229
    %v782 = vunpack.c.l.b16 %v230
    %v783 = vunpack.c.l.b16 %v231
    %v784 = vunpack.c.l.b16 %v232
    %v785 = vunpack.c.l.b16 %v233
    %v786 = vunpack.c.l.b16 %v234
    %v787 = vunpack.c.l.b16 %v235
    %v788 = vunpack.c.l.b16 %v236
    %v789 = vunpack.c.l.b16 %v237
    %v790 = vunpack.c.l.b16 %v238
    %v791 = vunpack.c.l.b16 %v239
    %v792 = vunpack.c.l.b16 %v240
    %v793 = vunpack.c.l.b16 %v241
    %v794 = vunpack.c.l.b16 %v242
    %v795 = vunpack.c.l.b16 %v243
    %v796 = vunpack.c.l.b16 %v244
    %v797 = vunpack.c.l.b16 %v245
    %v798 = vunpack.c.l.b16 %v246
    %v799 = vunpack.c.l.b16 %v247
    %v800 = vunpack.c.l.b16 %v248
    %v801 = vunpack.c.l.b16 %v249
    %v802 = vunpack.c.l.b16 %v250
    %v803 = vunpack.c.l.b16 %v251
    %v804 = vunpack.c.l.b16 %v252
    %v805 = vunpack.c.l.b16 %v253
    %v806 = vunpack.c.l.b16 %v254
    %v807 = vunpack.c.l.b16 %v255
    %v808 = vunpack.c.l.b16 %v256
    %v809 = vunpack.c.l.b16 %v257
    %v810 = vunpack.c.l.b16 %v258
    %v811 = vunpack.c.l.b16 %v259
    %v812 = vunpack.c.l.b16 %v260
    %v813 = vunpack.c.l.b16 %v261
    %v814 = vunpack.c.l.b16 %v262
    %v815 = vunpack.c.l.b16 %v263
    %v816 = vunpack.c.l.b16 %v264
    %v817 = vunpack.c.l.b16 %v265
    %v818 = vunpack.c.l.b16 %v266
    %v819 = vunpack.c.l.b16 %v267
    %v820 = vunpack.c.l.b16 %v268
    %v821 = vunpack.c.l.b16 %v269
    %v822 = vunpack.c.l.b16 %v270
    %v823 = vunpack.c.l.b16 %v271
    %v824 = vunpack.c.l.b16 %v272
    %v825 = vunpack.c.l.b16 %v273
    %v826 = vunpack.c.l.b16 %v274
    %v827 = vunpack.c.l.b16 %v275
    %v828 = vunpack.c.l.b16 %v276
    %v829 = vunpack.c.l.b16 %v277
    %v830 = vunpack.c.l.b16 %v278
    %v831 = vpack.c.b16 %v576, %v575
    %v832 = vpack.c.b16 %v578, %v577
    %v833 = vpack.c.b16 %v580, %v579
    %v834 = vpack.c.b16 %v582, %v581
    %v835 = vpack.c.b16 %v584, %v583
    %v836 = vpack.c.b16 %v586, %v585
    %v837 = vpack.c.b16 %v588, %v587
    %v838 = vpack.c.b16 %v590, %v589
    %v839 = vpack.c.b16 %v592, %v591
    %v840 = vpack.c.b16 %v594, %v593
    %v841 = vpack.c.b16 %v596, %v595
    %v842 = vpack.c.b16 %v598, %v597
    %v843 = vpack.c.b16 %v600, %v599
    %v844 = vpack.c.b16 %v602, %v601
    %v845 = vpack.c.b16 %v604, %v603
    %v846 = vpack.c.b16 %v606, %v605
    %v847 = vpack.c.b16 %v608, %v607
    %v848 = vpack.c.b16 %v610, %v609
    %v849 = vpack.c.b16 %v612, %v611
    %v850 = vpack.c.b16 %v614, %v613
    %v851 = vpack.c.b16 %v616, %v615
    %v852 = vpack.c.b16 %v618, %v617
    %v853 = vpack.c.b16 %v620, %v619
    %v854 = vpack.c.b16 %v622, %v621
    %v855 = vpack.c.b16 %v624, %v623
    %v856 = vpack.c.b16 %v626, %v625
    %v857 = vpack.c.b16 %v628, %v627
    %v858 = vpack.c.b16 %v630, %v629
    %v859 = vpack.c.b16 %v632, %v631
    %v860 = vpack.c.b16 %v634, %v633
    %v861 = vpack.c.b16 %v636, %v635
    %v862 = vpack.c.b16 %v638, %v637
    %v863 = vpack.c.b16 %v640, %v639
    %v864 = vpack.c.b16 %v642, %v641
    %v865 = vpack.c.b16 %v644, %v643
    %v866 = vpack.c.b16 %v646, %v645
    %v867 = vpack.c.b16 %v648, %v647
    %v868 = vpack.c.b16 %v650, %v649
    %v869 = vpack.c.b16 %v652, %v651
    %v870 = vpack.c.b16 %v654, %v653
    %v871 = vpack.c.b16 %v656, %v655
    %v872 = vpack.c.b16 %v658, %v657
    %v873 = vpack.c.b16 %v660, %v659
    %v874 = vpack.c.b16 %v662, %v661
    %v875 = vpack.c.b16 %v664, %v663
    %v876 = vpack.c.b16 %v666, %v665
    %v877 = vpack.c.b16 %v668, %v667
    %v878 = vpack.c.b16 %v670, %v669
    %v879 = vpack.c.b16 %v672, %v671
    %v880 = vpack.c.b16 %v674, %v673
    %v881 = vpack.c.b16 %v676, %v675
    %v882 = vpack.c.b16 %v678, %v677
    %v883 = vpack.c.b16 %v680, %v679
    %v884 = vpack.c.b16 %v682, %v681
    %v885 = vpack.c.b16 %v684, %v683
    %v886 = vpack.c.b16 %v686, %v685
    %v887 = vpack.c.b16 %v688, %v687
    %v888 = vpack.c.b16 %v690, %v689
    %v889 = vpack.c.b16 %v692, %v691
    %v890 = vpack.c.b16 %v694, %v693
    %v891 = vpack.c.b16 %v696, %v695
    %v892 = vpack.c.b16 %v698, %v697
    %v893 = vpack.c.b16 %v700, %v699
    %v894 = vpack.c.b16 %v702, %v701
    %v895 = vpack.c.b16 %v704, %v703
    %v896 = vpack.c.b16 %v706, %v705
    %v897 = vpack.c.b16 %v708, %v707
    %v898 = vpack.c.b16 %v710, %v709
    %v899 = vpack.c.b16 %v712, %v711
    %v900 = vpack.c.b16 %v714, %v713
    %v901 = vpack.c.b16 %v716, %v715
    %v902 = vpack.c.b16 %v718, %v717
    %v903 = vpack.c.b16 %v720, %v719
    %v904 = vpack.c.b16 %v722, %v721
    %v905 = vpack.c.b16 %v724, %v723
    %v906 = vpack.c.b16 %v726, %v725
    %v907 = vpack.c.b16 %v728, %v727
    %v908 = vpack.c.b16 %v730, %v729
    %v909 = vpack.c.b16 %v732, %v731
    %v910 = vpack.c.b16 %v734, %v733
    %v911 = vpack.c.b16 %v736, %v735
    %v912 = vpack.c.b16 %v738, %v737
    %v913 = vpack.c.b16 %v740, %v739
    %v914 = vpack.c.b16 %v742, %v741
    %v915 = vpack.c.b16 %v744, %v743
    %v916 = vpack.c.b16 %v746, %v745
    %v917 = vpack.c.b16 %v748, %v747
    %v918 = vpack.c.b16 %v750, %v749
    %v919 = vpack.c.b16 %v752, %v751
    %v920 = vpack.c.b16 %v754, %v753
    %v921 = vpack.c.b16 %v756, %v755
    %v922 = vpack.c.b16 %v758, %v757
    %v923 = vpack.c.b16 %v760, %v759
    %v924 = vpack.c.b16 %v762, %v761
    %v925 = vpack.c.b16 %v764, %v763
    %v926 = vpack.c.b16 %v766, %v765
    %v927 = vpack.c.b16 %v768, %v767
    %v928 = vpack.c.b16 %v770, %v769
    %v929 = vpack.c.b16 %v772, %v771
    %v930 = vpack.c.b16 %v774, %v773
    %v931 = vpack.c.b16 %v776, %v775
    %v932 = vpack.c.b16 %v778, %v777
    %v933 = vpack.c.b16 %v780, %v779
    %v934 = vpack.c.b16 %v782, %v781
    %v935 = vpack.c.b16 %v784, %v783
    %v936 = vpack.c.b16 %v786, %v785
    %v937 = vpack.c.b16 %v788, %v787
    %v938 = vpack.c.b16 %v790, %v789
    %v939 = vpack.c.b16 %v792, %v791
    %v940 = vpack.c.b16 %v794, %v793
    %v941 = vpack.c.b16 %v796, %v795
    %v942 = vpack.c.b16 %v798, %v797
    %v943 = vpack.c.b16 %v800, %v799
    %v944 = vpack.c.b16 %v802, %v801
    %v945 = vpack.c.b16 %v804, %v803
    %v946 = vpack.c.b16 %v806, %v805
    %v947 = vpack.c.b16 %v808, %v807
    %v948 = vpack.c.b16 %v810, %v809
    %v949 = vpack.c.b16 %v812, %v811
    %v950 = vpack.c.b16 %v814, %v813
    %v951 = vpack.c.b16 %v816, %v815
    %v952 = vpack.c.b16 %v818, %v817
    %v953 = vpack.c.b16 %v820, %v819
    %v954 = vpack.c.b16 %v822, %v821
    %v955 = vpack.c.b16 %v824, %v823
    %v956 = vpack.c.b16 %v826, %v825
    %v957 = vpack.c.b16 %v828, %v827
    %v958 = vpack.c.b16 %v830, %v829
    %1087 = vmatpush.bf16.msra.mxu0 %v838
    %1088 = vmatpush.bf16.msra.mxu0 %v837
    %1089 = vmatpush.bf16.msra.mxu0 %v836
    %1090 = vmatpush.bf16.msra.mxu0 %v835
    %1091 = vmatpush.bf16.msra.mxu0 %v834
    %1092 = vmatpush.bf16.msra.mxu0 %v833
    %1093 = vmatpush.bf16.msra.mxu0 %v832
    %1094 = vmatpush.bf16.msra.mxu0 %v831
    %1095 = vmatmul.bf16.gmra.mxu0 %v285
    %v1096 = vpop.f32.mrf.mxu0
    %v1097 = vadd.f32 %v281, %v1096
    %v1098 = vpop.f32.mrf.mxu0
    %1099 = vdwg.mxu0
    %1100 = vmatpush.bf16.msra.mxu0 %v846
    %1101 = vmatpush.bf16.msra.mxu0 %v845
    %1102 = vmatpush.bf16.msra.mxu0 %v844
    %1103 = vmatpush.bf16.msra.mxu0 %v843
    %1104 = vmatpush.bf16.msra.mxu0 %v842
    %1105 = vmatpush.bf16.msra.mxu0 %v841
    %1106 = vmatpush.bf16.msra.mxu0 %v840
    %1107 = vmatpush.bf16.msra.mxu0 %v839
    %1108 = vmatmul.bf16.gmra.mxu0 %v286
    %v1109 = vpop.f32.mrf.mxu0
    %v1110 = vadd.f32 %v1097, %v1109
    %v1111 = vpop.f32.mrf.mxu0
    %1112 = vdwg.mxu0
    %1113 = vmatpush.bf16.msra.mxu0 %v854
    %1114 = vmatpush.bf16.msra.mxu0 %v853
    %1115 = vmatpush.bf16.msra.mxu0 %v852
    %1116 = vmatpush.bf16.msra.mxu0 %v851
    %1117 = vmatpush.bf16.msra.mxu0 %v850
    %1118 = vmatpush.bf16.msra.mxu0 %v849
    %1119 = vmatpush.bf16.msra.mxu0 %v848
    %1120 = vmatpush.bf16.msra.mxu0 %v847
    %1121 = vmatmul.bf16.gmra.mxu0 %v287
    %v1122 = vpop.f32.mrf.mxu0
    %v1123 = vadd.f32 %v1110, %v1122
    %v1124 = vpop.f32.mrf.mxu0
    %1125 = vdwg.mxu0
    %1126 = vmatpush.bf16.msra.mxu0 %v862
    %1127 = vmatpush.bf16.msra.mxu0 %v861
    %1128 = vmatpush.bf16.msra.mxu0 %v860
    %1129 = vmatpush.bf16.msra.mxu0 %v859
    %1130 = vmatpush.bf16.msra.mxu0 %v858
    %1131 = vmatpush.bf16.msra.mxu0 %v857
    %1132 = vmatpush.bf16.msra.mxu0 %v856
    %1133 = vmatpush.bf16.msra.mxu0 %v855
    %1134 = vmatmul.bf16.gmra.mxu0 %v288
    %v1135 = vpop.f32.mrf.mxu0
    %v1136 = vadd.f32 %v1123, %v1135
    %v1137 = vpop.f32.mrf.mxu0
    %1138 = vdwg.mxu0
    %1139 = vmatpush.bf16.msra.mxu0 %v870
    %1140 = vmatpush.bf16.msra.mxu0 %v869
    %1141 = vmatpush.bf16.msra.mxu0 %v868
    %1142 = vmatpush.bf16.msra.mxu0 %v867
    %1143 = vmatpush.bf16.msra.mxu0 %v866
    %1144 = vmatpush.bf16.msra.mxu0 %v865
    %1145 = vmatpush.bf16.msra.mxu0 %v864
    %1146 = vmatpush.bf16.msra.mxu0 %v863
    %1147 = vmatmul.bf16.gmra.mxu0 %v289
    %v1148 = vpop.f32.mrf.mxu0
    %v1149 = vadd.f32 %v1136, %v1148
    %v1150 = vpop.f32.mrf.mxu0
    %1151 = vdwg.mxu0
    %1152 = vmatpush.bf16.msra.mxu0 %v878
    %1153 = vmatpush.bf16.msra.mxu0 %v877
    %1154 = vmatpush.bf16.msra.mxu0 %v876
    %1155 = vmatpush.bf16.msra.mxu0 %v875
    %1156 = vmatpush.bf16.msra.mxu0 %v874
    %1157 = vmatpush.bf16.msra.mxu0 %v873
    %1158 = vmatpush.bf16.msra.mxu0 %v872
    %1159 = vmatpush.bf16.msra.mxu0 %v871
    %1160 = vmatmul.bf16.gmra.mxu0 %v290
    %v1161 = vpop.f32.mrf.mxu0
    %v1162 = vadd.f32 %v1149, %v1161
    %v1163 = vpop.f32.mrf.mxu0
    %1164 = vdwg.mxu0
    %1165 = vmatpush.bf16.msra.mxu0 %v886
    %1166 = vmatpush.bf16.msra.mxu0 %v885
    %1167 = vmatpush.bf16.msra.mxu0 %v884
    %1168 = vmatpush.bf16.msra.mxu0 %v883
    %1169 = vmatpush.bf16.msra.mxu0 %v882
    %1170 = vmatpush.bf16.msra.mxu0 %v881
    %1171 = vmatpush.bf16.msra.mxu0 %v880
    %1172 = vmatpush.bf16.msra.mxu0 %v879
    %1173 = vmatmul.bf16.gmra.mxu0 %v291
    %v1174 = vpop.f32.mrf.mxu0
    %v1175 = vadd.f32 %v1162, %v1174
    %v1176 = vpop.f32.mrf.mxu0
    %1177 = vdwg.mxu0
    %1178 = vmatpush.bf16.msra.mxu0 %v894
    %1179 = vmatpush.bf16.msra.mxu0 %v893
    %1180 = vmatpush.bf16.msra.mxu0 %v892
    %1181 = vmatpush.bf16.msra.mxu0 %v891
    %1182 = vmatpush.bf16.msra.mxu0 %v890
    %1183 = vmatpush.bf16.msra.mxu0 %v889
    %1184 = vmatpush.bf16.msra.mxu0 %v888
    %1185 = vmatpush.bf16.msra.mxu0 %v887
    %1186 = vmatmul.bf16.gmra.mxu0 %v292
    %v1187 = vpop.f32.mrf.mxu0
    %v1188 = vadd.f32 %v1175, %v1187
    %v1189 = vpop.f32.mrf.mxu0
    %1190 = vdwg.mxu0
    %1191 = vmatpush.bf16.msra.mxu0 %v902
    %1192 = vmatpush.bf16.msra.mxu0 %v901
    %1193 = vmatpush.bf16.msra.mxu0 %v900
    %1194 = vmatpush.bf16.msra.mxu0 %v899
    %1195 = vmatpush.bf16.msra.mxu0 %v898
    %1196 = vmatpush.bf16.msra.mxu0 %v897
    %1197 = vmatpush.bf16.msra.mxu0 %v896
    %1198 = vmatpush.bf16.msra.mxu0 %v895
    %1199 = vmatmul.bf16.gmra.mxu0 %v295
    %v1200 = vpop.f32.mrf.mxu0
    %v1201 = vadd.f32 %v1188, %v1200
    %v1202 = vpop.f32.mrf.mxu0
    %1203 = vdwg.mxu0
    %1204 = vmatpush.bf16.msra.mxu0 %v910
    %1205 = vmatpush.bf16.msra.mxu0 %v909
    %1206 = vmatpush.bf16.msra.mxu0 %v908
    %1207 = vmatpush.bf16.msra.mxu0 %v907
    %1208 = vmatpush.bf16.msra.mxu0 %v906
    %1209 = vmatpush.bf16.msra.mxu0 %v905
    %1210 = vmatpush.bf16.msra.mxu0 %v904
    %1211 = vmatpush.bf16.msra.mxu0 %v903
    %1212 = vmatmul.bf16.gmra.mxu0 %v296
    %v1213 = vpop.f32.mrf.mxu0
    %v1214 = vadd.f32 %v1201, %v1213
    %v1215 = vpop.f32.mrf.mxu0
    %1216 = vdwg.mxu0
    %1217 = vmatpush.bf16.msra.mxu0 %v918
    %1218 = vmatpush.bf16.msra.mxu0 %v917
    %1219 = vmatpush.bf16.msra.mxu0 %v916
    %1220 = vmatpush.bf16.msra.mxu0 %v915
    %1221 = vmatpush.bf16.msra.mxu0 %v914
    %1222 = vmatpush.bf16.msra.mxu0 %v913
    %1223 = vmatpush.bf16.msra.mxu0 %v912
    %1224 = vmatpush.bf16.msra.mxu0 %v911
    %1225 = vmatmul.bf16.gmra.mxu0 %v297
    %v1226 = vpop.f32.mrf.mxu0
    %v1227 = vadd.f32 %v1214, %v1226
    %v1228 = vpop.f32.mrf.mxu0
    %1229 = vdwg.mxu0
    %1230 = vmatpush.bf16.msra.mxu0 %v926
    %1231 = vmatpush.bf16.msra.mxu0 %v925
    %1232 = vmatpush.bf16.msra.mxu0 %v924
    %1233 = vmatpush.bf16.msra.mxu0 %v923
    %1234 = vmatpush.bf16.msra.mxu0 %v922
    %1235 = vmatpush.bf16.msra.mxu0 %v921
    %1236 = vmatpush.bf16.msra.mxu0 %v920
    %1237 = vmatpush.bf16.msra.mxu0 %v919
    %1238 = vmatmul.bf16.gmra.mxu0 %v298
    %v1239 = vpop.f32.mrf.mxu0
    %v1240 = vadd.f32 %v1227, %v1239
    %v1241 = vpop.f32.mrf.mxu0
    %1242 = vdwg.mxu0
    %1243 = vmatpush.bf16.msra.mxu0 %v934
    %1244 = vmatpush.bf16.msra.mxu0 %v933
    %1245 = vmatpush.bf16.msra.mxu0 %v932
    %1246 = vmatpush.bf16.msra.mxu0 %v931
    %1247 = vmatpush.bf16.msra.mxu0 %v930
    %1248 = vmatpush.bf16.msra.mxu0 %v929
    %1249 = vmatpush.bf16.msra.mxu0 %v928
    %1250 = vmatpush.bf16.msra.mxu0 %v927
    %1251 = vmatmul.bf16.gmra.mxu0 %v299
    %v1252 = vpop.f32.mrf.mxu0
    %v1253 = vadd.f32 %v1240, %v1252
    %v1254 = vpop.f32.mrf.mxu0
    %1255 = vdwg.mxu0
    %1256 = vmatpush.bf16.msra.mxu0 %v942
    %1257 = vmatpush.bf16.msra.mxu0 %v941
    %1258 = vmatpush.bf16.msra.mxu0 %v940
    %1259 = vmatpush.bf16.msra.mxu0 %v939
    %1260 = vmatpush.bf16.msra.mxu0 %v938
    %1261 = vmatpush.bf16.msra.mxu0 %v937
    %1262 = vmatpush.bf16.msra.mxu0 %v936
    %1263 = vmatpush.bf16.msra.mxu0 %v935
    %1264 = vmatmul.bf16.gmra.mxu0 %v300
    %v1265 = vpop.f32.mrf.mxu0
    %v1266 = vadd.f32 %v1253, %v1265
    %v1267 = vpop.f32.mrf.mxu0
    %1268 = vdwg.mxu0
    %1269 = vmatpush.bf16.msra.mxu0 %v950
    %1270 = vmatpush.bf16.msra.mxu0 %v949
    %1271 = vmatpush.bf16.msra.mxu0 %v948
    %1272 = vmatpush.bf16.msra.mxu0 %v947
    %1273 = vmatpush.bf16.msra.mxu0 %v946
    %1274 = vmatpush.bf16.msra.mxu0 %v945
    %1275 = vmatpush.bf16.msra.mxu0 %v944
    %1276 = vmatpush.bf16.msra.mxu0 %v943
    %1277 = vmatmul.bf16.gmra.mxu0 %v301
    %v1278 = vpop.f32.mrf.mxu0
    %v1279 = vadd.f32 %v1266, %v1278
    %v1280 = vpop.f32.mrf.mxu0
    %1281 = vdwg.mxu0
    %1282 = vmatpush.bf16.msra.mxu0 %v958
    %1283 = vmatpush.bf16.msra.mxu0 %v957
    %1284 = vmatpush.bf16.msra.mxu0 %v956
    %1285 = vmatpush.bf16.msra.mxu0 %v955
    %1286 = vmatpush.bf16.msra.mxu0 %v954
    %1287 = vmatpush.bf16.msra.mxu0 %v953
    %1288 = vmatpush.bf16.msra.mxu0 %v952
    %1289 = vmatpush.bf16.msra.mxu0 %v951
    %1290 = vmatmul.bf16.gmra.mxu0 %v302
    %v1291 = vpop.f32.mrf.mxu0
    %v1292 = vadd.f32 %v1279, %v1291
    %v1293 = vpop.f32.mrf.mxu0
    %1294 = vdwg.mxu0
    %v1295 = vmax.f32 %v1292, 0.0
    %v1296 = vpack.c.bf16 %v1295, %v1295
    %v1297 = vld [vmem:[%s3] sm:$0xf]
    %v1298 = vld [vmem:[%s3 + $0x4] sm:$0xf]
    %v1299 = vld [vmem:[%s3 + $0x8] sm:$0xf]
    %v1300 = vld [vmem:[%s3 + $0xc] sm:$0xf]
    %v1301 = vld [vmem:[%s3 + $0x10] sm:$0xf]
    %v1302 = vld [vmem:[%s3 + $0x14] sm:$0xf]
    %v1303 = vld [vmem:[%s3 + $0x18] sm:$0xf]
    %v1304 = vld [vmem:[%s3 + $0x1c] sm:$0xf]
    %v1305 = vld [vmem:[%s3 + $0x20] sm:$0xf]
    %v1306 = vld [vmem:[%s3 + $0x24] sm:$0xf]
    %v1307 = vld [vmem:[%s3 + $0x28] sm:$0xf]
    %v1308 = vld [vmem:[%s3 + $0x2c] sm:$0xf]
    %v1309 = vld [vmem:[%s3 + $0x30] sm:$0xf]
    %v1310 = vld [vmem:[%s3 + $0x34] sm:$0xf]
    %v1311 = vld [vmem:[%s3 + $0x38] sm:$0xf]
    %v1312 = vld [vmem:[%s3 + $0x3c] sm:$0xf]
    %v1313 = vld [vmem:[%s4] sm:$0x1]
    %v1315 = vperm.slane %v1313, 0
    %v1333 = vunpack.c.l.b16 %v1297
    %v1334 = vunpack.c.l.b16 %v1298
    %v1335 = vunpack.c.l.b16 %v1299
    %v1336 = vunpack.c.l.b16 %v1300
    %v1337 = vunpack.c.l.b16 %v1301
    %v1338 = vunpack.c.l.b16 %v1302
    %v1339 = vunpack.c.l.b16 %v1303
    %v1340 = vunpack.c.l.b16 %v1304
    %v1341 = vunpack.c.l.b16 %v1305
    %v1342 = vunpack.c.l.b16 %v1306
    %v1343 = vunpack.c.l.b16 %v1307
    %v1344 = vunpack.c.l.b16 %v1308
    %v1345 = vunpack.c.l.b16 %v1309
    %v1346 = vunpack.c.l.b16 %v1310
    %v1347 = vunpack.c.l.b16 %v1311
    %v1348 = vunpack.c.l.b16 %v1312
    %v1349 = vpack.c.b16 %v1334, %v1333
    %v1350 = vpack.c.b16 %v1336, %v1335
    %v1351 = vpack.c.b16 %v1338, %v1337
    %v1352 = vpack.c.b16 %v1340, %v1339
    %v1353 = vpack.c.b16 %v1342, %v1341
    %v1354 = vpack.c.b16 %v1344, %v1343
    %v1355 = vpack.c.b16 %v1346, %v1345
    %v1356 = vpack.c.b16 %v1348, %v1347
    %1365 = vmatpush.bf16.msra.mxu0 %v1356
    %1366 = vmatpush.bf16.msra.mxu0 %v1355
    %1367 = vmatpush.bf16.msra.mxu0 %v1354
    %1368 = vmatpush.bf16.msra.mxu0 %v1353
    %1369 = vmatpush.bf16.msra.mxu0 %v1352
    %1370 = vmatpush.bf16.msra.mxu0 %v1351
    %1371 = vmatpush.bf16.msra.mxu0 %v1350
    %1372 = vmatpush.bf16.msra.mxu0 %v1349
    %1373 = vmatmul.bf16.gmra.mxu0 %v1296
    %v1374 = vpop.f32.mrf.mxu0
    %v1375 = vadd.f32 %v1315, %v1374
    %v1376 = vpop.f32.mrf.mxu0
    %1377 = vdwg.mxu0
    %1378 = vst [vmem:[#allocation2] sm:$0x3] %v1375
    // Predicated region
    $region22: #{simple_cnn_forward.5} parent=1 // pred_check
      _
    $region23: #{simple_cnn_forward.5} parent=1 // pred_check_branch
      %1380 = sbr.rel (0) target = $region25
    $region24: #{simple_cnn_forward.5} parent=1 // pred_region
      %1382 = vsyncadd [#allocation3], 0
      %s1384 = sshll.u32 [#allocation2], 4
      %s1385 = int_to_ptr.vmem [resolvable:$true] %s1384
      %s1386 = sshll.u32 %s5, 4
      %s1387 = int_to_ptr.hbm [resolvable:$true] %s1386
      %1389 = dma.vmem_to_hbm [thread:$0]  %s1385, 32, %s1387, [#allocation3]
    $region25: #{simple_cnn_forward.5} parent=1 // pred_fallthru
      _
    // Predicated region
    $region26: #{simple_cnn_forward.5} parent=1 // pred_check
      _
    $region27: #{simple_cnn_forward.5} parent=1 // pred_check_branch
      %1391 = sbr.rel (0) target = $region29
    $region28: #{simple_cnn_forward.5} parent=1 // pred_region
      %1393 = dma.done [#allocation3], 32
    $region29: #{simple_cnn_forward.5} parent=1 // pred_fallthru
      _
    %1394 = vsyncpa [#allocation3], 1

</llo_original>
